<compile_context>
chip_gen: v7x
topology: tpu7x:2x2x1
jax: 0.10.0
libtpu: 0.0.40
codegen_flags: <defaults>
</compile_context>

<pallas_src>
import jax
import jax.numpy as jnp
import numpy as np
from jax.experimental import pallas as pl
from jax.experimental.pallas import tpu as pltpu


def _make_kernel(num_models, batch, tgt_len):
    inv_m = 1.0 / float(num_models)
    B, T = batch, tgt_len

    def kernel(emb_ref, mem_ref, wq_ref, wc_ref, wo_ref,
               out_ref, mean_attn_ref, ctx_sc, attn_acc):
        m = pl.program_id(0)

        # combine_attns accumulator: contiguous (B, T, S) scratch, resident
        # across the (sequential) M grid; zeroed once at the first member.
        @pl.when(m == 0)
        def _():
            attn_acc[...] = jnp.zeros_like(attn_acc)

        # All M weight sets are VMEM-resident; pick the current member with a
        # dynamic leading-axis index (no per-step weight re-DMA).
        wq = wq_ref[m]          # (H, H)
        wc = wc_ref[m]          # (H, H)
        wo = wo_ref[m]          # (H, H)

        emb = emb_ref[...]      # (B*T, H) in the caller's dtype (f32 or bf16)
        cdt = emb.dtype         # MXU operand dtype; accumulation is f32 below

        # Query projection: one 2-D MXU matmul over all B*T rows.
        q_all = jnp.dot(emb, wq, preferred_element_type=jnp.float32)  # (B*T,H) f32
        q_mm = q_all.astype(cdt)

        # Attention is inherently batched over b; B is a compile-time constant,
        # so the loop is unrolled and every slice of the *native* (S, B, H)
        # memory-bank tile is static.  Each step is a plain 2-D MXU matmul.
        for b in range(B):
            q_b = q_mm[b * T:(b + 1) * T, :]                  # (T, H)
            mem_b = mem_ref[:, b, :]                          # (S, H) native slice
            scores = jnp.einsum('th,sh->ts', q_b, mem_b,
                                preferred_element_type=jnp.float32)   # (T, S) f32
            scores = scores - jnp.max(scores, axis=-1, keepdims=True)
            p = jnp.exp(scores)
            inv_l = pl.reciprocal(jnp.sum(p, axis=-1, keepdims=True),
                                  approx=True)                # EUP slot
            attn = p * inv_l                                  # (T, S) f32
            ctx = jnp.einsum('ts,sh->th', attn.astype(cdt), mem_b,
                             preferred_element_type=jnp.float32)      # (T, H) f32
            ctx_sc[b * T:(b + 1) * T, :] = ctx.astype(ctx_sc.dtype)
            # Dense (T, S) slab accumulate; 1/M scale + native-layout store are
            # deferred to the last-member epilogue.
            attn_acc[b] += attn

        # Output projections folded into two single 2-D MXU matmuls + one tanh.
        ctx_all = ctx_sc[...].astype(cdt)                     # (B*T, H)
        out_all = jnp.tanh(
            jnp.dot(ctx_all, wc, preferred_element_type=jnp.float32)
            + jnp.dot(q_mm, wo, preferred_element_type=jnp.float32))  # (B*T,H) f32

        # Store directly into the OpenNMT-native (T, B, H) block (no wrapper
        # transpose); per-b slab stores are static.
        for b in range(B):
            out_ref[:, b, :] = out_all[b * T:(b + 1) * T, :].astype(out_ref.dtype)

        # Epilogue: single 1/M scale fused with the only strided store of the
        # combined attention into its native (T, B, S) layout.
        @pl.when(m == num_models - 1)
        def _():
            for b in range(B):
                mean_attn_ref[:, b, :] = attn_acc[b] * inv_m

    return kernel


def ensemble_decoder_forward(tgt_ids, memory_bank, emb_tables, wq, wc, wo):
    """Runs the ensemble of decoders and combines attentions.

    tgt_ids      : (T, B) int32
    memory_bank  : (M, S, B, H)   -- native OpenNMT layout, consumed as-is
    emb_tables   : (M, V, H)
    wq, wc, wo   : (M, H, H)
    Returns (outputs (M, T, B, H), mean_attn (T, B, S)).
    """
    M, S, B, H = memory_bank.shape
    T = tgt_ids.shape[0]

    # Embedding lookup stays in XLA (real vocab tables don't fit VMEM), but the
    # gather directly produces the b-major (M, B*T, H) slab the kernel wants:
    # no transpose of any large tensor on either side of the kernel.
    # TODO(synk): for small vocabularies the gather could move in-kernel via
    #   scalar-prefetched target ids.
    flat_ids = tgt_ids.T.reshape(-1)                       # (B*T,) tiny
    emb_flat = jnp.take(emb_tables, flat_ids, axis=1)      # (M, B*T, H)

    kernel = _make_kernel(M, B, T)
    out_dtype = memory_bank.dtype

    outputs, mean_attn = pl.pallas_call(
        kernel,
        out_shape=(
            jax.ShapeDtypeStruct((M, T, B, H), out_dtype),   # native layout
            jax.ShapeDtypeStruct((T, B, S), jnp.float32),    # native layout
        ),
        grid_spec=pltpu.PrefetchScalarGridSpec(
            num_scalar_prefetch=0,
            grid=(M,),
            in_specs=[
                # per-member embedding slab (B*T, H)
                pl.BlockSpec((None, B * T, H), lambda m: (m, 0, 0)),
                # memory bank consumed in its native (M, S, B, H) layout
                pl.BlockSpec((None, S, B, H), lambda m: (m, 0, 0, 0)),
                # all M weight sets resident in VMEM for the whole grid
                pl.BlockSpec((M, H, H), lambda m: (0, 0, 0)),
                pl.BlockSpec((M, H, H), lambda m: (0, 0, 0)),
                pl.BlockSpec((M, H, H), lambda m: (0, 0, 0)),
            ],
            out_specs=[
                pl.BlockSpec((None, T, B, H), lambda m: (m, 0, 0, 0)),
                # same block for every m -> resident across grid, written once
                # in the last-member epilogue
                pl.BlockSpec((T, B, S), lambda m: (0, 0, 0)),
            ],
            scratch_shapes=[
                pltpu.VMEM((B * T, H), memory_bank.dtype),   # ctx staging
                pltpu.VMEM((B, T, S), jnp.float32),          # attn accumulator
            ],
        ),
        compiler_params=pltpu.CompilerParams(
            dimension_semantics=("arbitrary",),     # M is the mean-attn reduction
            vmem_limit_bytes=48 * 1024 * 1024,      # fits v7x 64 MiB, > 16/32 MiB defaults
        ),
    )(emb_flat, memory_bank, wq, wc, wo)

    return outputs, mean_attn


def _reference(tgt_ids, memory_bank, emb_tables, wq, wc, wo):
    """Pure-JAX reference of the same ensemble forward (for verification)."""
    M = memory_bank.shape[0]
    outs, attns = [], []
    for m in range(M):
        emb = emb_tables[m][tgt_ids]                          # (T, B, H)
        q = jnp.einsum('tbh,hk->tbk', emb, wq[m])
        scores = jnp.einsum('tbh,sbh->tbs', q, memory_bank[m])
        attn = jax.nn.softmax(scores, axis=-1)                # (T, B, S)
        ctx = jnp.einsum('tbs,sbh->tbh', attn, memory_bank[m])
        out = jnp.tanh(jnp.einsum('tbh,hk->tbk', ctx, wc[m])
                       + jnp.einsum('tbh,hk->tbk', q, wo[m]))
        outs.append(out)
        attns.append(attn)
    return jnp.stack(outs), jnp.mean(jnp.stack(attns), axis=0)


if __name__ == "__main__":
    M, T, B, S, H, V = 2, 8, 2, 16, 32, 20

    key = jax.random.PRNGKey(0)
    k_ids, k_mem, k_emb, k_wq, k_wc, k_wo = jax.random.split(key, 6)

    tgt_ids = jax.random.randint(k_ids, (T, B), 0, V, dtype=jnp.int32)
    memory_bank = jax.random.normal(k_mem, (M, S, B, H), dtype=jnp.float32)
    emb_tables = jax.random.normal(k_emb, (M, V, H), dtype=jnp.float32) * 0.1
    wq = jax.random.normal(k_wq, (M, H, H), dtype=jnp.float32) * 0.1
    wc = jax.random.normal(k_wc, (M, H, H), dtype=jnp.float32) * 0.1
    wo = jax.random.normal(k_wo, (M, H, H), dtype=jnp.float32) * 0.1

    outputs, mean_attn = jax.jit(ensemble_decoder_forward)(
        tgt_ids, memory_bank, emb_tables, wq, wc, wo)
    jax.block_until_ready((outputs, mean_attn))

    ref_out, ref_attn = _reference(tgt_ids, memory_bank, emb_tables, wq, wc, wo)
    # Tolerances account for pl.reciprocal(approx=True) in the softmax
    # denominator (EUP approximate reciprocal); approx=False recovers <1e-5.
    np.testing.assert_allclose(np.asarray(outputs), np.asarray(ref_out),
                               rtol=2e-2, atol=5e-3)
    np.testing.assert_allclose(np.asarray(mean_attn), np.asarray(ref_attn),
                               rtol=2e-2, atol=2e-3)

    print("KERNEL_OK")
</pallas_src>

<mosaic_0001>
module attributes {stable_mosaic.version = 11 : i64} {
  func.func @kernel(%arg0: i32, %arg1: memref<1x16x32xf32, #tpu.memory_space<vmem>>, %arg2: memref<1x16x2x32xf32, #tpu.memory_space<vmem>>, %arg3: memref<2x32x32xf32, #tpu.memory_space<vmem>>, %arg4: memref<2x32x32xf32, #tpu.memory_space<vmem>>, %arg5: memref<2x32x32xf32, #tpu.memory_space<vmem>>, %arg6: memref<1x8x2x32xf32, #tpu.memory_space<vmem>>, %arg7: memref<8x2x16xf32, #tpu.memory_space<vmem>>, %arg8: memref<16x32xf32, #tpu.memory_space<vmem>>, %arg9: memref<2x8x16xf32, #tpu.memory_space<vmem>>) attributes {dimension_semantics = [#tpu.dimension_semantics<arbitrary>], iteration_bounds = array<i64: 2>, scalar_prefetch = 0 : i64, scratch_operands = 2 : i64, tpu.core_type = #tpu.core_type<tc>, window_params = [{transform_indices = @transform_0, window_bounds = array<i64: 1, 16, 32>}, {transform_indices = @transform_1, window_bounds = array<i64: 1, 16, 2, 32>}, {pipeline_mode = #tpu.pipeline_mode<synchronous>, transform_indices = @transform_2, window_bounds = array<i64: 2, 32, 32>}, {pipeline_mode = #tpu.pipeline_mode<synchronous>, transform_indices = @transform_3, window_bounds = array<i64: 2, 32, 32>}, {pipeline_mode = #tpu.pipeline_mode<synchronous>, transform_indices = @transform_4, window_bounds = array<i64: 2, 32, 32>}, {transform_indices = @transform_5, window_bounds = array<i64: 1, 8, 2, 32>}, {pipeline_mode = #tpu.pipeline_mode<synchronous>, transform_indices = @transform_6, window_bounds = array<i64: 8, 2, 16>}]} {
    %c0_i32 = arith.constant 0 : i32
    %0 = arith.cmpi eq, %arg0, %c0_i32 : i32
    %1 = arith.extui %0 : i1 to i32
    %c0_i32_0 = arith.constant 0 : i32
    %2 = arith.cmpi ne, %1, %c0_i32_0 : i32
    scf.if %2 {
      %cst_52 = arith.constant 0.000000e+00 : f32
      %75 = vector.broadcast %cst_52 : f32 to vector<2x8x16xf32>
      %c0_53 = arith.constant 0 : index
      %c0_54 = arith.constant 0 : index
      %c0_55 = arith.constant 0 : index
      %76 = vector.load %arg9[%c0_53, %c0_54, %c0_55] : memref<2x8x16xf32, #tpu.memory_space<vmem>>, vector<2x8x16xf32>
      tpu.vector_store %arg9[%c0_53, %c0_54, %c0_55], %75 {strides = array<i32>} : memref<2x8x16xf32, #tpu.memory_space<vmem>>, vector<2x8x16xf32>,
    } else {
    }
    %3 = arith.index_cast %arg0 : i32 to index
    %c0 = arith.constant 0 : index
    %c0_1 = arith.constant 0 : index
    %4 = vector.load %arg3[%3, %c0, %c0_1] : memref<2x32x32xf32, #tpu.memory_space<vmem>>, vector<1x32x32xf32>
    %5 = vector.shape_cast %4 : vector<1x32x32xf32> to vector<32x32xf32>
    %6 = arith.index_cast %arg0 : i32 to index
    %c0_2 = arith.constant 0 : index
    %c0_3 = arith.constant 0 : index
    %7 = vector.load %arg4[%6, %c0_2, %c0_3] : memref<2x32x32xf32, #tpu.memory_space<vmem>>, vector<1x32x32xf32>
    %8 = vector.shape_cast %7 : vector<1x32x32xf32> to vector<32x32xf32>
    %9 = arith.index_cast %arg0 : i32 to index
    %c0_4 = arith.constant 0 : index
    %c0_5 = arith.constant 0 : index
    %10 = vector.load %arg5[%9, %c0_4, %c0_5] : memref<2x32x32xf32, #tpu.memory_space<vmem>>, vector<1x32x32xf32>
    %11 = vector.shape_cast %10 : vector<1x32x32xf32> to vector<32x32xf32>
    %c0_6 = arith.constant 0 : index
    %c0_7 = arith.constant 0 : index
    %c0_8 = arith.constant 0 : index
    %12 = vector.load %arg1[%c0_6, %c0_7, %c0_8] : memref<1x16x32xf32, #tpu.memory_space<vmem>>, vector<1x16x32xf32>
    %13 = vector.shape_cast %12 : vector<1x16x32xf32> to vector<16x32xf32>
    %cst = arith.constant dense<0.000000e+00> : vector<16x32xf32>
    %14 = tpu.matmul %13, %5, %cst {dimension_numbers = #tpu.dot_dimension_numbers<[1], [0], [0], [1], [0, 0, 1, 1], [], []>} : vector<16x32xf32>, vector<32x32xf32>, vector<16x32xf32> -> vector<16x32xf32>
    %15 = vector.extract_strided_slice %14 {offsets = [0, 0], sizes = [8, 32], strides = [1, 1]} : vector<16x32xf32> to vector<8x32xf32>
    %c0_9 = arith.constant 0 : index
    %c0_10 = arith.constant 0 : index
    %c0_11 = arith.constant 0 : index
    %c0_12 = arith.constant 0 : index
    %16 = vector.load %arg2[%c0_9, %c0_10, %c0_11, %c0_12] : memref<1x16x2x32xf32, #tpu.memory_space<vmem>>, vector<1x16x1x32xf32>
    %17 = vector.shape_cast %16 : vector<1x16x1x32xf32> to vector<16x32xf32>
    "tpu.trace_start"() <{level = 10 : i32, message = "th,sh->ts"}> : () -> ()
    %cst_13 = arith.constant dense<0.000000e+00> : vector<8x16xf32>
    %18 = tpu.matmul %15, %17, %cst_13 {dimension_numbers = #tpu.dot_dimension_numbers<[1], [1], [0], [0], [0, 0, 1, 0], [], []>} : vector<8x32xf32>, vector<16x32xf32>, vector<8x16xf32> -> vector<8x16xf32>
    "tpu.trace_stop"() : () -> ()
    %cst_14 = arith.constant dense<0xFF800000> : vector<8xf32>
    %19 = vector.multi_reduction <maximumf>, %18, %cst_14 [1] : vector<8x16xf32> to vector<8xf32>
    %20 = vector.shape_cast %19 : vector<8xf32> to vector<8x1xf32>
    %21 = vector.broadcast %20 : vector<8x1xf32> to vector<8x16xf32>
    %22 = arith.subf %18, %21 : vector<8x16xf32>
    %23 = math.exp %22 : vector<8x16xf32>
    %cst_15 = arith.constant dense<0.000000e+00> : vector<8xf32>
    %24 = vector.multi_reduction <add>, %23, %cst_15 [1] : vector<8x16xf32> to vector<8xf32>
    %25 = vector.shape_cast %24 : vector<8xf32> to vector<8x1xf32>
    %26 = tpu.reciprocal %25 {approx = true} : vector<8x1xf32> -> vector<8x1xf32>
    %27 = vector.broadcast %26 : vector<8x1xf32> to vector<8x16xf32>
    %28 = arith.mulf %23, %27 : vector<8x16xf32>
    "tpu.trace_start"() <{level = 10 : i32, message = "ts,sh->th"}> : () -> ()
    %cst_16 = arith.constant dense<0.000000e+00> : vector<8x32xf32>
    %29 = tpu.matmul %28, %17, %cst_16 {dimension_numbers = #tpu.dot_dimension_numbers<[1], [0], [0], [1], [0, 0, 1, 1], [], []>} : vector<8x16xf32>, vector<16x32xf32>, vector<8x32xf32> -> vector<8x32xf32>
    "tpu.trace_stop"() : () -> ()
    %c0_17 = arith.constant 0 : index
    %c0_18 = arith.constant 0 : index
    %30 = vector.load %arg8[%c0_17, %c0_18] : memref<16x32xf32, #tpu.memory_space<vmem>>, vector<8x32xf32>
    tpu.vector_store %arg8[%c0_17, %c0_18], %29 {strides = array<i32>} : memref<16x32xf32, #tpu.memory_space<vmem>>, vector<8x32xf32>,
    %c0_19 = arith.constant 0 : index
    %c0_20 = arith.constant 0 : index
    %c0_21 = arith.constant 0 : index
    %31 = vector.load %arg9[%c0_19, %c0_20, %c0_21] : memref<2x8x16xf32, #tpu.memory_space<vmem>>, vector<1x8x16xf32>
    %32 = vector.shape_cast %31 : vector<1x8x16xf32> to vector<8x16xf32>
    %33 = arith.addf %32, %28 : vector<8x16xf32>
    %c0_22 = arith.constant 0 : index
    %c0_23 = arith.constant 0 : index
    %c0_24 = arith.constant 0 : index
    %34 = vector.load %arg9[%c0_22, %c0_23, %c0_24] : memref<2x8x16xf32, #tpu.memory_space<vmem>>, vector<1x8x16xf32>
    %35 = vector.shape_cast %34 : vector<1x8x16xf32> to vector<8x16xf32>
    %36 = vector.shape_cast %33 : vector<8x16xf32> to vector<1x8x16xf32>
    tpu.vector_store %arg9[%c0_22, %c0_23, %c0_24], %36 {strides = array<i32>} : memref<2x8x16xf32, #tpu.memory_space<vmem>>, vector<1x8x16xf32>,
    %37 = vector.extract_strided_slice %14 {offsets = [8, 0], sizes = [8, 32], strides = [1, 1]} : vector<16x32xf32> to vector<8x32xf32>
    %c0_25 = arith.constant 0 : index
    %c0_26 = arith.constant 0 : index
    %c1 = arith.constant 1 : index
    %c0_27 = arith.constant 0 : index
    %38 = vector.load %arg2[%c0_25, %c0_26, %c1, %c0_27] : memref<1x16x2x32xf32, #tpu.memory_space<vmem>>, vector<1x16x1x32xf32>
    %39 = vector.shape_cast %38 : vector<1x16x1x32xf32> to vector<16x32xf32>
    "tpu.trace_start"() <{level = 10 : i32, message = "th,sh->ts"}> : () -> ()
    %cst_28 = arith.constant dense<0.000000e+00> : vector<8x16xf32>
    %40 = tpu.matmul %37, %39, %cst_28 {dimension_numbers = #tpu.dot_dimension_numbers<[1], [1], [0], [0], [0, 0, 1, 0], [], []>} : vector<8x32xf32>, vector<16x32xf32>, vector<8x16xf32> -> vector<8x16xf32>
    "tpu.trace_stop"() : () -> ()
    %cst_29 = arith.constant dense<0xFF800000> : vector<8xf32>
    %41 = vector.multi_reduction <maximumf>, %40, %cst_29 [1] : vector<8x16xf32> to vector<8xf32>
    %42 = vector.shape_cast %41 : vector<8xf32> to vector<8x1xf32>
    %43 = vector.broadcast %42 : vector<8x1xf32> to vector<8x16xf32>
    %44 = arith.subf %40, %43 : vector<8x16xf32>
    %45 = math.exp %44 : vector<8x16xf32>
    %cst_30 = arith.constant dense<0.000000e+00> : vector<8xf32>
    %46 = vector.multi_reduction <add>, %45, %cst_30 [1] : vector<8x16xf32> to vector<8xf32>
    %47 = vector.shape_cast %46 : vector<8xf32> to vector<8x1xf32>
    %48 = tpu.reciprocal %47 {approx = true} : vector<8x1xf32> -> vector<8x1xf32>
    %49 = vector.broadcast %48 : vector<8x1xf32> to vector<8x16xf32>
    %50 = arith.mulf %45, %49 : vector<8x16xf32>
    "tpu.trace_start"() <{level = 10 : i32, message = "ts,sh->th"}> : () -> ()
    %cst_31 = arith.constant dense<0.000000e+00> : vector<8x32xf32>
    %51 = tpu.matmul %50, %39, %cst_31 {dimension_numbers = #tpu.dot_dimension_numbers<[1], [0], [0], [1], [0, 0, 1, 1], [], []>} : vector<8x16xf32>, vector<16x32xf32>, vector<8x32xf32> -> vector<8x32xf32>
    "tpu.trace_stop"() : () -> ()
    %c8 = arith.constant 8 : index
    %c0_32 = arith.constant 0 : index
    %52 = vector.load %arg8[%c8, %c0_32] : memref<16x32xf32, #tpu.memory_space<vmem>>, vector<8x32xf32>
    tpu.vector_store %arg8[%c8, %c0_32], %51 {strides = array<i32>} : memref<16x32xf32, #tpu.memory_space<vmem>>, vector<8x32xf32>,
    %c1_33 = arith.constant 1 : index
    %c0_34 = arith.constant 0 : index
    %c0_35 = arith.constant 0 : index
    %53 = vector.load %arg9[%c1_33, %c0_34, %c0_35] : memref<2x8x16xf32, #tpu.memory_space<vmem>>, vector<1x8x16xf32>
    %54 = vector.shape_cast %53 : vector<1x8x16xf32> to vector<8x16xf32>
    %55 = arith.addf %54, %50 : vector<8x16xf32>
    %c1_36 = arith.constant 1 : index
    %c0_37 = arith.constant 0 : index
    %c0_38 = arith.constant 0 : index
    %56 = vector.load %arg9[%c1_36, %c0_37, %c0_38] : memref<2x8x16xf32, #tpu.memory_space<vmem>>, vector<1x8x16xf32>
    %57 = vector.shape_cast %56 : vector<1x8x16xf32> to vector<8x16xf32>
    %58 = vector.shape_cast %55 : vector<8x16xf32> to vector<1x8x16xf32>
    tpu.vector_store %arg9[%c1_36, %c0_37, %c0_38], %58 {strides = array<i32>} : memref<2x8x16xf32, #tpu.memory_space<vmem>>, vector<1x8x16xf32>,
    %c0_39 = arith.constant 0 : index
    %c0_40 = arith.constant 0 : index
    %59 = vector.load %arg8[%c0_39, %c0_40] : memref<16x32xf32, #tpu.memory_space<vmem>>, vector<16x32xf32>
    %cst_41 = arith.constant dense<0.000000e+00> : vector<16x32xf32>
    %60 = tpu.matmul %59, %8, %cst_41 {dimension_numbers = #tpu.dot_dimension_numbers<[1], [0], [0], [1], [0, 0, 1, 1], [], []>} : vector<16x32xf32>, vector<32x32xf32>, vector<16x32xf32> -> vector<16x32xf32>
    %cst_42 = arith.constant dense<0.000000e+00> : vector<16x32xf32>
    %61 = tpu.matmul %14, %11, %cst_42 {dimension_numbers = #tpu.dot_dimension_numbers<[1], [0], [0], [1], [0, 0, 1, 1], [], []>} : vector<16x32xf32>, vector<32x32xf32>, vector<16x32xf32> -> vector<16x32xf32>
    %62 = arith.addf %60, %61 : vector<16x32xf32>
    %63 = math.tanh %62 : vector<16x32xf32>
    %64 = vector.extract_strided_slice %63 {offsets = [0, 0], sizes = [8, 32], strides = [1, 1]} : vector<16x32xf32> to vector<8x32xf32>
    %c0_43 = arith.constant 0 : index
    %c0_44 = arith.constant 0 : index
    %c0_45 = arith.constant 0 : index
    %c0_46 = arith.constant 0 : index
    %65 = vector.load %arg6[%c0_43, %c0_44, %c0_45, %c0_46] : memref<1x8x2x32xf32, #tpu.memory_space<vmem>>, vector<1x8x1x32xf32>
    %66 = vector.shape_cast %65 : vector<1x8x1x32xf32> to vector<8x32xf32>
    %67 = vector.shape_cast %64 : vector<8x32xf32> to vector<1x8x1x32xf32>
    tpu.vector_store %arg6[%c0_43, %c0_44, %c0_45, %c0_46], %67 {strides = array<i32>} : memref<1x8x2x32xf32, #tpu.memory_space<vmem>>, vector<1x8x1x32xf32>,
    %68 = vector.extract_strided_slice %63 {offsets = [8, 0], sizes = [8, 32], strides = [1, 1]} : vector<16x32xf32> to vector<8x32xf32>
    %c0_47 = arith.constant 0 : index
    %c0_48 = arith.constant 0 : index
    %c1_49 = arith.constant 1 : index
    %c0_50 = arith.constant 0 : index
    %69 = vector.load %arg6[%c0_47, %c0_48, %c1_49, %c0_50] : memref<1x8x2x32xf32, #tpu.memory_space<vmem>>, vector<1x8x1x32xf32>
    %70 = vector.shape_cast %69 : vector<1x8x1x32xf32> to vector<8x32xf32>
    %71 = vector.shape_cast %68 : vector<8x32xf32> to vector<1x8x1x32xf32>
    tpu.vector_store %arg6[%c0_47, %c0_48, %c1_49, %c0_50], %71 {strides = array<i32>} : memref<1x8x2x32xf32, #tpu.memory_space<vmem>>, vector<1x8x1x32xf32>,
    %c1_i32 = arith.constant 1 : i32
    %72 = arith.cmpi eq, %arg0, %c1_i32 : i32
    %73 = arith.extui %72 : i1 to i32
    %c0_i32_51 = arith.constant 0 : i32
    %74 = arith.cmpi ne, %73, %c0_i32_51 : i32
    scf.if %74 {
      %c0_52 = arith.constant 0 : index
      %c0_53 = arith.constant 0 : index
      %c0_54 = arith.constant 0 : index
      %75 = vector.load %arg9[%c0_52, %c0_53, %c0_54] : memref<2x8x16xf32, #tpu.memory_space<vmem>>, vector<1x8x16xf32>
      %76 = vector.shape_cast %75 : vector<1x8x16xf32> to vector<8x16xf32>
      %cst_55 = arith.constant 5.000000e-01 : f32
      %77 = vector.broadcast %cst_55 : f32 to vector<8x16xf32>
      %78 = arith.mulf %76, %77 : vector<8x16xf32>
      %c0_56 = arith.constant 0 : index
      %c0_57 = arith.constant 0 : index
      %c0_58 = arith.constant 0 : index
      %79 = vector.load %arg7[%c0_56, %c0_57, %c0_58] : memref<8x2x16xf32, #tpu.memory_space<vmem>>, vector<8x1x16xf32>
      %80 = vector.shape_cast %79 : vector<8x1x16xf32> to vector<8x16xf32>
      %81 = vector.shape_cast %78 : vector<8x16xf32> to vector<8x1x16xf32>
      tpu.vector_store %arg7[%c0_56, %c0_57, %c0_58], %81 {strides = array<i32>} : memref<8x2x16xf32, #tpu.memory_space<vmem>>, vector<8x1x16xf32>,
      %c1_59 = arith.constant 1 : index
      %c0_60 = arith.constant 0 : index
      %c0_61 = arith.constant 0 : index
      %82 = vector.load %arg9[%c1_59, %c0_60, %c0_61] : memref<2x8x16xf32, #tpu.memory_space<vmem>>, vector<1x8x16xf32>
      %83 = vector.shape_cast %82 : vector<1x8x16xf32> to vector<8x16xf32>
      %cst_62 = arith.constant 5.000000e-01 : f32
      %84 = vector.broadcast %cst_62 : f32 to vector<8x16xf32>
      %85 = arith.mulf %83, %84 : vector<8x16xf32>
      %c0_63 = arith.constant 0 : index
      %c1_64 = arith.constant 1 : index
      %c0_65 = arith.constant 0 : index
      %86 = vector.load %arg7[%c0_63, %c1_64, %c0_65] : memref<8x2x16xf32, #tpu.memory_space<vmem>>, vector<8x1x16xf32>
      %87 = vector.shape_cast %86 : vector<8x1x16xf32> to vector<8x16xf32>
      %88 = vector.shape_cast %85 : vector<8x16xf32> to vector<8x1x16xf32>
      tpu.vector_store %arg7[%c0_63, %c1_64, %c0_65], %88 {strides = array<i32>} : memref<8x2x16xf32, #tpu.memory_space<vmem>>, vector<8x1x16xf32>,
    } else {
    }
    return
  }
  func.func @transform_0(%arg0: i32) -> (i32, i32, i32) {
    %c0_i32 = arith.constant 0 : i32
    %c0_i32_0 = arith.constant 0 : i32
    %c0_i32_1 = arith.constant 0 : i32
    return %arg0, %c0_i32, %c0_i32_0 : i32, i32, i32
  }
  func.func @transform_1(%arg0: i32) -> (i32, i32, i32, i32) {
    %c0_i32 = arith.constant 0 : i32
    %c0_i32_0 = arith.constant 0 : i32
    %c0_i32_1 = arith.constant 0 : i32
    %c0_i32_2 = arith.constant 0 : i32
    return %arg0, %c0_i32, %c0_i32_0, %c0_i32_1 : i32, i32, i32, i32
  }
  func.func @transform_2(%arg0: i32) -> (i32, i32, i32) {
    %c0_i32 = arith.constant 0 : i32
    %c0_i32_0 = arith.constant 0 : i32
    %c0_i32_1 = arith.constant 0 : i32
    %c0_i32_2 = arith.constant 0 : i32
    return %c0_i32, %c0_i32_0, %c0_i32_1 : i32, i32, i32
  }
  func.func @transform_3(%arg0: i32) -> (i32, i32, i32) {
    %c0_i32 = arith.constant 0 : i32
    %c0_i32_0 = arith.constant 0 : i32
    %c0_i32_1 = arith.constant 0 : i32
    %c0_i32_2 = arith.constant 0 : i32
    return %c0_i32, %c0_i32_0, %c0_i32_1 : i32, i32, i32
  }
  func.func @transform_4(%arg0: i32) -> (i32, i32, i32) {
    %c0_i32 = arith.constant 0 : i32
    %c0_i32_0 = arith.constant 0 : i32
    %c0_i32_1 = arith.constant 0 : i32
    %c0_i32_2 = arith.constant 0 : i32
    return %c0_i32, %c0_i32_0, %c0_i32_1 : i32, i32, i32
  }
  func.func @transform_5(%arg0: i32) -> (i32, i32, i32, i32) {
    %c0_i32 = arith.constant 0 : i32
    %c0_i32_0 = arith.constant 0 : i32
    %c0_i32_1 = arith.constant 0 : i32
    %c0_i32_2 = arith.constant 0 : i32
    return %arg0, %c0_i32, %c0_i32_0, %c0_i32_1 : i32, i32, i32, i32
  }
  func.func @transform_6(%arg0: i32) -> (i32, i32, i32) {
    %c0_i32 = arith.constant 0 : i32
    %c0_i32_0 = arith.constant 0 : i32
    %c0_i32_1 = arith.constant 0 : i32
    %c0_i32_2 = arith.constant 0 : i32
    return %c0_i32, %c0_i32_0, %c0_i32_1 : i32, i32, i32
  }
}

</mosaic_0001>

<llo_original>
// kernel: ensemble_decoder_forward.1
$region0: #{ensemble_decoder_forward.1}
  #allocation0 [shape = 'u32[]', space=smem, size = 0x4, offset = 0x4, fixed_abs, tag = 'smem constant byte address 0x4 - core index']
  #allocation1 [shape = 'u32[144,128]{1,0:T(1,128)}', space=vmem, size = 0x12000, scoped, tag = 'internal scratch']
  #allocation2 [shape = 'f32[16,32]{1,0:T(8,128)}', space=vmem, size = 0x2000, scoped, tag = 'scratch operand']
  #allocation3 [shape = 'f32[2,8,16]{2,1,0:T(8,128)}', space=vmem, size = 0x2000, scoped, tag = 'scratch operand']
  %s0 = inlined_call_operand.vmem [shape: f32[2,16,32], index: 0, kind: input, shape index: {}]
  %s1 = inlined_call_operand.vmem [shape: f32[2,16,2,32], index: 1, kind: input, shape index: {}]
  %s2 = inlined_call_operand.vmem [shape: f32[2,32,32], index: 2, kind: input, shape index: {}]
  %s3 = inlined_call_operand.hbm [shape: f32[2,32,32], index: 3, kind: input, shape index: {}]
  %s4 = inlined_call_operand.hbm [shape: f32[2,32,32], index: 4, kind: input, shape index: {}]
  %s5 = inlined_call_operand.hbm [shape: f32[2,8,2,32], index: 5, kind: output, shape index: {0}]
  %s6 = inlined_call_operand.hbm [shape: f32[8,2,16], index: 6, kind: output, shape index: {1}]
  %7 = xla_tuple %s5, %s6
  %s8 = sld [smem:[#allocation0]]
  $region77: #{ensemble_decoder_forward.1} parent=0
    _
  %s10 = ssub.s32 1, %s8
  %s11 = scalar_select 0, %s10, %s8
  $region1: #{ensemble_decoder_forward.1} parent=0
    #allocation4 [shape = 'u8[32768]{0}', space=vmem, size = 0x8000, scoped, tag = 'input window, operand 3, single buffered']
    #allocation5 [shape = 's32[2]{0}', space=sflag, size = 0x8, scoped, tag = 'scoped memory for ensemble_decoder_forward.1']
    #allocation6 [shape = 's32[2]{0}', space=sflag, size = 0x8, scoped, tag = 'scoped memory for ensemble_decoder_forward.1']
    #allocation7 [shape = 'u8[32768]{0}', space=vmem, size = 0x8000, scoped, tag = 'input window, operand 4, single buffered']
    #allocation8 [shape = 's32[1]{0}', space=sflag, size = 0x4, scoped, tag = 'scoped memory for ensemble_decoder_forward.1']
    #allocation9 [shape = 'u8[16384]{0}', space=vmem, size = 0x4000, scoped, tag = 'output window, operand 0']
    #allocation10 [shape = 'u8[8192]{0}', space=vmem, size = 0x2000, scoped, tag = 'output window, operand 1, single buffered']
    #allocation11 [shape = 's32[1]{0}', space=sflag, size = 0x4, scoped, tag = 'scoped memory for ensemble_decoder_forward.1']
    %12 = vsyncpa [#allocation5], 0
    %13 = vsyncpa [#allocation8], 0
    %14 = vsyncpa [#allocation6], 0
    %s15 = scalar_lea.sflag [#allocation6], 1
    %16 = vsyncpa %s15, 0
    %17 = vsyncpa [#allocation11], 0
    loop: start=0, step=1, limit=4
    $region2: #{ensemble_decoder_forward.1} parent=1 // loop_pre_header
      _
    $region3: #{ensemble_decoder_forward.1} parent=1 // loop_header
      %s19 = sphi 0, %s23
      %p20 = scmp.ge.s32.totalorder %s19, 4
      %s29 = sphi 0, %s31
      %s32 = sphi 0, %s29
      %s33 = sphi 0, %s32
      %s49 = sphi 0, %s33
      %s55 = sphi 0, %s57
      %s58 = sphi 0, %s55
      %s59 = sphi 0, %s58
      %s75 = sphi 0, %s59
      %s79 = sphi 0, %s79
      %s81 = sphi 0, %s79
      %s82 = sphi 0, %s81
      %s96 = sphi 0, %s82
      %s100 = sphi 0, %s100
      %s102 = sphi 0, %s100
      %s103 = sphi 0, %s102
      %s117 = sphi 0, %s103
      %s121 = sphi 0, %s121
      %s123 = sphi 0, %s121
      %s124 = sphi 0, %s123
      %s138 = sphi 0, %s124
      %s144 = sphi 0, %s146
      %s147 = sphi 0, %s144
      %s148 = sphi 0, %s147
      %s164 = sphi 0, %s148
      %s168 = sphi 0, %s168
      %s170 = sphi 0, %s168
      %s171 = sphi 0, %s170
      %s185 = sphi 0, %s171
    $region4: #{ensemble_decoder_forward.1} parent=1 // loop_header_branch
      %22 = sbr.rel (%p20) target = $region8
    $region5: #{ensemble_decoder_forward.1} parent=1 // loop_body
      %s24 = ssub.s32 %s19, 1
      %s25 = ssub.s32 %s19, 2
      %s26 = sadd.s32 %s19, 1
      %s27 = ssub.s32 %s19, %s26
      %p28 = scmp.eq.s32.totalorder %s27, 0
      %s30 = sadd.s32 %s29, 1
      %s31 = scalar_select %p28, %s29, %s30
      %p34 = pneg %p28
      %p35 = scmp.eq.s32.totalorder %s19, 1
      %p36 = por %p34, %p35
      %p37 = scmp.ne.s32.totalorder %s29, %s32
      %p38 = scmp.eq.s32.totalorder %s19, 0
      %p39 = por %p37, %p38
      %p40 = scmp.ne.s32.totalorder %s29, %s32
      %p41 = scmp.eq.s32.totalorder %s24, 1
      %p42 = por %p40, %p41
      %p43 = scmp.ne.s32.totalorder %s32, %s33
      %p44 = scmp.eq.s32.totalorder %s24, 0
      %p45 = por %p43, %p44
      %p46 = scmp.ne.s32.totalorder %s32, %s33
      %p47 = scmp.eq.s32.totalorder %s25, 1
      %p48 = por %p46, %p47
      %p50 = scmp.ne.s32.totalorder %s33, %s49
      %p51 = scmp.eq.s32.totalorder %s25, 0
      %p52 = por %p50, %p51
      %s53 = ssub.s32 %s19, %s26
      %p54 = scmp.eq.s32.totalorder %s53, 0
      %s56 = sadd.s32 %s55, 1
      %s57 = scalar_select %p54, %s55, %s56
      %p60 = pneg %p54
      %p61 = scmp.eq.s32.totalorder %s19, 1
      %p62 = por %p60, %p61
      %p63 = scmp.ne.s32.totalorder %s55, %s58
      %p64 = scmp.eq.s32.totalorder %s19, 0
      %p65 = por %p63, %p64
      %p66 = scmp.ne.s32.totalorder %s55, %s58
      %p67 = scmp.eq.s32.totalorder %s24, 1
      %p68 = por %p66, %p67
      %p69 = scmp.ne.s32.totalorder %s58, %s59
      %p70 = scmp.eq.s32.totalorder %s24, 0
      %p71 = por %p69, %p70
      %p72 = scmp.ne.s32.totalorder %s58, %s59
      %p73 = scmp.eq.s32.totalorder %s25, 1
      %p74 = por %p72, %p73
      %p76 = scmp.ne.s32.totalorder %s59, %s75
      %p77 = scmp.eq.s32.totalorder %s25, 0
      %p78 = por %p76, %p77
      %s80 = sadd.s32 %s79, 1
      %p83 = scmp.eq.s32.totalorder %s19, 1
      %p84 = scmp.ne.s32.totalorder %s79, %s81
      %p85 = scmp.eq.s32.totalorder %s19, 0
      %p86 = por %p84, %p85
      %p87 = scmp.ne.s32.totalorder %s79, %s81
      %p88 = scmp.eq.s32.totalorder %s24, 1
      %p89 = por %p87, %p88
      %p90 = scmp.ne.s32.totalorder %s81, %s82
      %p91 = scmp.eq.s32.totalorder %s24, 0
      %p92 = por %p90, %p91
      %p93 = scmp.ne.s32.totalorder %s81, %s82
      %p94 = scmp.eq.s32.totalorder %s25, 1
      %p95 = por %p93, %p94
      %p97 = scmp.ne.s32.totalorder %s82, %s96
      %p98 = scmp.eq.s32.totalorder %s25, 0
      %p99 = por %p97, %p98
      %s101 = sadd.s32 %s100, 1
      %p104 = scmp.eq.s32.totalorder %s19, 1
      %p105 = scmp.ne.s32.totalorder %s100, %s102
      %p106 = scmp.eq.s32.totalorder %s19, 0
      %p107 = por %p105, %p106
      %p108 = scmp.ne.s32.totalorder %s100, %s102
      %p109 = scmp.eq.s32.totalorder %s24, 1
      %p110 = por %p108, %p109
      %p111 = scmp.ne.s32.totalorder %s102, %s103
      %p112 = scmp.eq.s32.totalorder %s24, 0
      %p113 = por %p111, %p112
      %p114 = scmp.ne.s32.totalorder %s102, %s103
      %p115 = scmp.eq.s32.totalorder %s25, 1
      %p116 = por %p114, %p115
      %p118 = scmp.ne.s32.totalorder %s103, %s117
      %p119 = scmp.eq.s32.totalorder %s25, 0
      %p120 = por %p118, %p119
      %s122 = sadd.s32 %s121, 1
      %p125 = scmp.eq.s32.totalorder %s19, 1
      %p126 = scmp.ne.s32.totalorder %s121, %s123
      %p127 = scmp.eq.s32.totalorder %s19, 0
      %p128 = por %p126, %p127
      %p129 = scmp.ne.s32.totalorder %s121, %s123
      %p130 = scmp.eq.s32.totalorder %s24, 1
      %p131 = por %p129, %p130
      %p132 = scmp.ne.s32.totalorder %s123, %s124
      %p133 = scmp.eq.s32.totalorder %s24, 0
      %p134 = por %p132, %p133
      %p135 = scmp.ne.s32.totalorder %s123, %s124
      %p136 = scmp.eq.s32.totalorder %s25, 1
      %p137 = por %p135, %p136
      %p139 = scmp.ne.s32.totalorder %s124, %s138
      %p140 = scmp.eq.s32.totalorder %s25, 0
      %p141 = por %p139, %p140
      %s142 = ssub.s32 %s19, %s26
      %p143 = scmp.eq.s32.totalorder %s142, 0
      %s145 = sadd.s32 %s144, 1
      %s146 = scalar_select %p143, %s144, %s145
      %p149 = pneg %p143
      %p150 = scmp.eq.s32.totalorder %s19, 1
      %p151 = por %p149, %p150
      %p152 = scmp.ne.s32.totalorder %s144, %s147
      %p153 = scmp.eq.s32.totalorder %s19, 0
      %p154 = por %p152, %p153
      %p155 = scmp.ne.s32.totalorder %s144, %s147
      %p156 = scmp.eq.s32.totalorder %s24, 1
      %p157 = por %p155, %p156
      %p158 = scmp.ne.s32.totalorder %s147, %s148
      %p159 = scmp.eq.s32.totalorder %s24, 0
      %p160 = por %p158, %p159
      %p161 = scmp.ne.s32.totalorder %s147, %s148
      %p162 = scmp.eq.s32.totalorder %s25, 1
      %p163 = por %p161, %p162
      %p165 = scmp.ne.s32.totalorder %s148, %s164
      %p166 = scmp.eq.s32.totalorder %s25, 0
      %p167 = por %p165, %p166
      %s169 = sadd.s32 %s168, 1
      %p172 = scmp.eq.s32.totalorder %s19, 1
      %p173 = scmp.ne.s32.totalorder %s168, %s170
      %p174 = scmp.eq.s32.totalorder %s19, 0
      %p175 = por %p173, %p174
      %p176 = scmp.ne.s32.totalorder %s168, %s170
      %p177 = scmp.eq.s32.totalorder %s24, 1
      %p178 = por %p176, %p177
      %p179 = scmp.ne.s32.totalorder %s170, %s171
      %p180 = scmp.eq.s32.totalorder %s24, 0
      %p181 = por %p179, %p180
      %p182 = scmp.ne.s32.totalorder %s170, %s171
      %p183 = scmp.eq.s32.totalorder %s25, 1
      %p184 = por %p182, %p183
      %p186 = scmp.ne.s32.totalorder %s171, %s185
      %p187 = scmp.eq.s32.totalorder %s25, 0
      %p188 = por %p186, %p187
      %p189 = scmp.le.s32.totalorder 1, %s19
      %p190 = scmp.lt.s32.totalorder %s19, 3
      %p191 = pnand %p189, %p190
      %p192 = pneg %p191
      // Predicated region
      $region9: #{ensemble_decoder_forward.1} parent=5 // pred_check
        _
      $region10: #{ensemble_decoder_forward.1} parent=5 // pred_check_branch
        %194 = sbr.rel (%p191) target = $region12
      $region11: #{ensemble_decoder_forward.1} parent=5 // pred_region
        %s195 = ssub.s32 %s19, 1
        // Predicated region
        $region13: #{ensemble_decoder_forward.1} parent=11 // pred_check
          %p196 = pneg %p92
        $region14: #{ensemble_decoder_forward.1} parent=11 // pred_check_branch
          %198 = sbr.rel (%p196) target = $region16
        $region15: #{ensemble_decoder_forward.1} parent=11 // pred_region
          _
        $region16: #{ensemble_decoder_forward.1} parent=11 // pred_fallthru
          _
        // Predicated region
        $region17: #{ensemble_decoder_forward.1} parent=11 // pred_check
          %p199 = pneg %p113
        $region18: #{ensemble_decoder_forward.1} parent=11 // pred_check_branch
          %201 = sbr.rel (%p199) target = $region20
        $region19: #{ensemble_decoder_forward.1} parent=11 // pred_region
          %s203 = ssub.s32 1024, 1024
          %204 = vsyncadd [#allocation5], %s203
          %s205 = sshll.u32 [#allocation4], 4
          %s206 = int_to_ptr.vmem [resolvable:$true] %s205
          %211 = dma.hbm_to_vmem [thread:$0]  %s3, 1024, %s206, [#allocation5], 128, 128, 8
        $region20: #{ensemble_decoder_forward.1} parent=11 // pred_fallthru
          _
        // Predicated region
        $region21: #{ensemble_decoder_forward.1} parent=11 // pred_check
          %p212 = pneg %p134
        $region22: #{ensemble_decoder_forward.1} parent=11 // pred_check_branch
          %214 = sbr.rel (%p212) target = $region24
        $region23: #{ensemble_decoder_forward.1} parent=11 // pred_region
          %s216 = ssub.s32 1024, 1024
          %217 = vsyncadd [#allocation8], %s216
          %s218 = sshll.u32 [#allocation7], 4
          %s219 = int_to_ptr.vmem [resolvable:$true] %s218
          %224 = dma.hbm_to_vmem [thread:$0]  %s4, 1024, %s219, [#allocation8], 128, 128, 8
        $region24: #{ensemble_decoder_forward.1} parent=11 // pred_fallthru
          _
      $region12: #{ensemble_decoder_forward.1} parent=5 // pred_fallthru
        _
      %p225 = scmp.lt.s32.totalorder %s19, 2
      // Predicated region
      $region25: #{ensemble_decoder_forward.1} parent=5 // pred_check
        %p226 = pneg %p225
      $region26: #{ensemble_decoder_forward.1} parent=5 // pred_check_branch
        %228 = sbr.rel (%p226) target = $region28
      $region27: #{ensemble_decoder_forward.1} parent=5 // pred_region
        // Predicated region
        $region29: #{ensemble_decoder_forward.1} parent=27 // pred_check
          %p229 = pneg %p39
        $region30: #{ensemble_decoder_forward.1} parent=27 // pred_check_branch
          %231 = sbr.rel (%p229) target = $region32
        $region31: #{ensemble_decoder_forward.1} parent=27 // pred_region
          %p232 = scmp.lt.s32.totalorder %s19, 1
          %s233 = scalar_select %p232, %s19, 1
          %s234 = smul.addr %s233, 2
          %s235 = smul.addr %s234, 8
          %s236 = scalar_lea.vmem %s0, %s235
        $region32: #{ensemble_decoder_forward.1} parent=27 // pred_fallthru
          _
        // Predicated region
        $region33: #{ensemble_decoder_forward.1} parent=27 // pred_check
          %p237 = pneg %p65
        $region34: #{ensemble_decoder_forward.1} parent=27 // pred_check_branch
          %239 = sbr.rel (%p237) target = $region36
        $region35: #{ensemble_decoder_forward.1} parent=27 // pred_region
          %p240 = scmp.lt.s32.totalorder %s19, 1
          %s241 = scalar_select %p240, %s19, 1
          %s242 = smul.addr %s241, 16
          %s243 = smul.addr %s242, 2
          %s244 = scalar_lea.vmem %s1, %s243
        $region36: #{ensemble_decoder_forward.1} parent=27 // pred_fallthru
          _
      $region28: #{ensemble_decoder_forward.1} parent=5 // pred_fallthru
        _
      %p245 = scmp.le.s32.totalorder 1, %s19
      %p246 = scmp.lt.s32.totalorder %s19, 3
      %p247 = pnand %p245, %p246
      %p248 = pneg %p247
      // Predicated region
      $region37: #{ensemble_decoder_forward.1} parent=5 // pred_check
        _
      $region38: #{ensemble_decoder_forward.1} parent=5 // pred_check_branch
        %250 = sbr.rel (%p247) target = $region40
      $region39: #{ensemble_decoder_forward.1} parent=5 // pred_region
        %s251 = ssub.s32 %s19, 1
        // Predicated region
        $region41: #{ensemble_decoder_forward.1} parent=39 // pred_check
          %p252 = pneg %p113
        $region42: #{ensemble_decoder_forward.1} parent=39 // pred_check_branch
          %254 = sbr.rel (%p252) target = $region44
        $region43: #{ensemble_decoder_forward.1} parent=39 // pred_region
          %255 = dma.done [#allocation5], 1024
        $region44: #{ensemble_decoder_forward.1} parent=39 // pred_fallthru
          _
        // Predicated region
        $region45: #{ensemble_decoder_forward.1} parent=39 // pred_check
          %p256 = pneg %p134
        $region46: #{ensemble_decoder_forward.1} parent=39 // pred_check_branch
          %258 = sbr.rel (%p256) target = $region48
        $region47: #{ensemble_decoder_forward.1} parent=39 // pred_region
          %259 = dma.done [#allocation8], 1024
        $region48: #{ensemble_decoder_forward.1} parent=39 // pred_fallthru
          _
        %p260 = scmp.lt.s32.totalorder %s24, 1
        %s261 = scalar_select %p260, %s24, 1
        %s262 = smul.addr %s261, 2
        %s263 = smul.addr %s262, 8
        %s264 = scalar_lea.vmem %s0, %s263
        %p265 = pneg %p45
        %p266 = pneg %p42
        %p267 = scmp.lt.s32.totalorder %s24, 1
        %s268 = scalar_select %p267, %s24, 1
        %s269 = smul.addr %s268, 16
        %s270 = smul.addr %s269, 2
        %s271 = scalar_lea.vmem %s1, %s270
        %p272 = pneg %p71
        %p273 = pneg %p68
        %p274 = pneg %p92
        %p275 = pneg %p89
        %p276 = pneg %p113
        %p277 = pneg %p110
        %p278 = pneg %p134
        %p279 = pneg %p131
        %p280 = pneg %p160
        %p281 = pneg %p157
        %s282 = sand.u32 %s147, 1
        %s283 = scalar_lea.sflag [#allocation6], %s282
        %s284 = sand.u32 %s147, 1
        %s285 = smul.addr %s284, 16
        %s286 = scalar_lea.vmem [#allocation9], %s285
        %p287 = pneg %p181
        %p288 = pneg %p178
        %p289 = scmp.lt.s32.totalorder %s24, 1
        %s290 = scalar_select %p289, %s24, 1
        %s291 = smul.addr %s290, 2
        %s292 = smul.addr %s291, 8
        %s293 = scalar_lea.vmem %s0, %s292
        %p294 = scmp.lt.s32.totalorder %s24, 1
        %s295 = scalar_select %p294, %s24, 1
        %s296 = smul.addr %s295, 16
        %s297 = smul.addr %s296, 2
        %s298 = scalar_lea.vmem %s1, %s297
        %p299 = scmp.eq.s32.totalorder %s24, 0
        // Predicated region
        $region49: #{ensemble_decoder_forward.1} parent=39 // pred_check
          %p300 = pneg %p299
        $region50: #{ensemble_decoder_forward.1} parent=39 // pred_check_branch
          %302 = sbr.rel (%p300) target = $region52
        $region51: #{ensemble_decoder_forward.1} parent=39 // pred_region
          %vm303 = vcmask 130048
          %304 = vst.msk [vmem:[#allocation3] sm:$0xff] %vm303, 0.0
          %305 = vst.msk [vmem:[#allocation3 + $0x8] sm:$0xff] %vm303, 0.0
        $region52: #{ensemble_decoder_forward.1} parent=39 // pred_fallthru
          _
        %s306 = smul.u32 %s24, 32
        %s307 = scalar_lea.vmem %s2, %s306
        %v308 = vld [vmem:[%s307] sm:$0xff]
        %v309 = vld [vmem:[%s307 + $0x8] sm:$0xff]
        %v310 = vld [vmem:[%s307 + $0x10] sm:$0xff]
        %v311 = vld [vmem:[%s307 + $0x18] sm:$0xff]
        %s312 = scalar_lea.vmem [#allocation4], %s306
        %v313 = vld [vmem:[%s312] sm:$0xff]
        %v314 = vld [vmem:[%s312 + $0x8] sm:$0xff]
        %v315 = vld [vmem:[%s312 + $0x10] sm:$0xff]
        %v316 = vld [vmem:[%s312 + $0x18] sm:$0xff]
        %s317 = scalar_lea.vmem [#allocation7], %s306
        %v318 = vld [vmem:[%s317] sm:$0xff]
        %v319 = vld [vmem:[%s317 + $0x8] sm:$0xff]
        %v320 = vld [vmem:[%s317 + $0x10] sm:$0xff]
        %v321 = vld [vmem:[%s317 + $0x18] sm:$0xff]
        %v322 = vld [vmem:[%s293] sm:$0xff]
        %v323 = vld [vmem:[%s293 + $0x8] sm:$0xff]
        %vm324 = vcmask 261120
        %v326 = vsel %vm324, %v322, 0
        %v329 = vsel %vm324, %v323, 0
        %331 = vmatprep.subr.mxu0 0.0
        %332 = vmatpush1.msra.mxu0 %v308
        %333 = vmatprep.subr.mxu0 0.0
        %334 = vmatpush1.msra.mxu0 %v309
        %335 = vmatprep.subr.mxu0 0.0
        %336 = vmatpush1.msra.mxu0 %v310
        %337 = vmatprep.subr.mxu0 0.0
        %338 = vmatpush1.msra.mxu0 %v311
        %339 = vmatprep.subr.mxu0 0.0
        %340 = vmatpush1.msra.mxu0 0.0
        %341 = vmatprep.subr.mxu0 0.0
        %342 = vmatpush1.msra.mxu0 0.0
        %343 = vmatprep.subr.mxu0 0.0
        %344 = vmatpush1.msra.mxu0 0.0
        %345 = vmatprep.subr.mxu0 0.0
        %346 = vmatpush1.msra.mxu0 0.0
        %347 = vmatprep.subr.mxu0 0.0
        %348 = vmatpush1.msra.mxu0 0.0
        %349 = vmatprep.subr.mxu0 0.0
        %350 = vmatpush1.msra.mxu0 0.0
        %351 = vmatprep.subr.mxu0 0.0
        %352 = vmatpush1.msra.mxu0 0.0
        %353 = vmatprep.subr.mxu0 0.0
        %354 = vmatpush1.msra.mxu0 0.0
        %355 = vmatprep.subr.mxu0 0.0
        %356 = vmatpush1.msra.mxu0 0.0
        %357 = vmatprep.subr.mxu0 0.0
        %358 = vmatpush1.msra.mxu0 0.0
        %359 = vmatprep.subr.mxu0 0.0
        %360 = vmatpush1.msra.mxu0 0.0
        %361 = vmatprep.subr.mxu0 0.0
        %362 = vmatpush1.msra.mxu0 0.0
        %363 = vmatprep.subr.mxu0 0.0
        %364 = vmatpush1.msra.mxu0 0.0
        %365 = vmatprep.subr.mxu0 0.0
        %366 = vmatpush1.msra.mxu0 0.0
        %367 = vmatprep.subr.mxu0 0.0
        %368 = vmatpush1.msra.mxu0 0.0
        %369 = vmatprep.subr.mxu0 0.0
        %370 = vmatpush1.msra.mxu0 0.0
        %371 = vmatprep.subr.mxu0 0.0
        %372 = vmatpush1.msra.mxu0 0.0
        %373 = vmatprep.subr.mxu0 0.0
        %374 = vmatpush1.msra.mxu0 0.0
        %375 = vmatprep.subr.mxu0 0.0
        %376 = vmatpush1.msra.mxu0 0.0
        %377 = vmatprep.subr.mxu0 0.0
        %378 = vmatpush1.msra.mxu0 0.0
        %379 = vmatprep.subr.mxu0 0.0
        %380 = vmatpush1.msra.mxu0 0.0
        %381 = vmatprep.subr.mxu0 0.0
        %382 = vmatpush1.msra.mxu0 0.0
        %383 = vmatprep.subr.mxu0 0.0
        %384 = vmatpush1.msra.mxu0 0.0
        %385 = vmatprep.subr.mxu0 0.0
        %386 = vmatpush1.msra.mxu0 0.0
        %387 = vmatprep.subr.mxu0 0.0
        %388 = vmatpush1.msra.mxu0 0.0
        %389 = vmatprep.subr.mxu0 0.0
        %390 = vmatpush1.msra.mxu0 0.0
        %391 = vmatprep.subr.mxu0 0.0
        %392 = vmatpush1.msra.mxu0 0.0
        %393 = vmatprep.subr.mxu0 0.0
        %394 = vmatpush1.msra.mxu0 0.0
        %395 = vmatprep.mubr.f32.mxu0 0.0
        %396 = vmatmul.mubr.f32.gmra.mrb[0].mxu0 %v326
        %v397 = vpop.f32.mrb[0].mxu0
        %v398 = vadd.f32 0.0, %v397
        %v399 = vpop.f32.mrb[0].mxu0
        %400 = vmatprep.mubr.f32.mxu0 0.0
        %401 = vmatmul.mubr.f32.gmra.mrb[0].mxu0 %v329
        %v402 = vpop.f32.mrb[0].mxu0
        %v403 = vadd.f32 0.0, %v402
        %v404 = vpop.f32.mrb[0].mxu0
        %405 = vdwg.mxu0
        %v406 = vld [vmem:[%s298] sm:$0x1]
        %v407 = vld [vmem:[%s298 + $0x2] sm:$0x1]
        %v408 = vld [vmem:[%s298 + $0x4] sm:$0x1]
        %v409 = vld [vmem:[%s298 + $0x6] sm:$0x1]
        %v410 = vld [vmem:[%s298 + $0x8] sm:$0x1]
        %v411 = vld [vmem:[%s298 + $0xa] sm:$0x1]
        %v412 = vld [vmem:[%s298 + $0xc] sm:$0x1]
        %v413 = vld [vmem:[%s298 + $0xe] sm:$0x1]
        %v414 = vld [vmem:[%s298 + $0x10] sm:$0x1]
        %v415 = vld [vmem:[%s298 + $0x12] sm:$0x1]
        %v416 = vld [vmem:[%s298 + $0x14] sm:$0x1]
        %v417 = vld [vmem:[%s298 + $0x16] sm:$0x1]
        %v418 = vld [vmem:[%s298 + $0x18] sm:$0x1]
        %v419 = vld [vmem:[%s298 + $0x1a] sm:$0x1]
        %v420 = vld [vmem:[%s298 + $0x1c] sm:$0x1]
        %v421 = vld [vmem:[%s298 + $0x1e] sm:$0x1]
        %v438 = vrot.slane %v407, 7
        %vm439 = vcmask 1041409
        %v440 = vsel %vm439, %v438, %v406
        %v441 = vrot.slane %v408, 6
        %vm442 = vcmask 1042434
        %v443 = vsel %vm442, %v441, %v440
        %v444 = vrot.slane %v409, 5
        %vm445 = vcmask 1043459
        %v446 = vsel %vm445, %v444, %v443
        %v447 = vrot.slane %v410, 4
        %vm448 = vcmask 1044484
        %v449 = vsel %vm448, %v447, %v446
        %v450 = vrot.slane %v411, 3
        %vm451 = vcmask 1045509
        %v452 = vsel %vm451, %v450, %v449
        %v453 = vrot.slane %v412, 2
        %vm454 = vcmask 1046534
        %v455 = vsel %vm454, %v453, %v452
        %v456 = vrot.slane %v413, 1
        %vm457 = vcmask 1047559
        %v458 = vsel %vm457, %v456, %v455
        %v459 = vrot.slane %v415, 7
        %v460 = vsel %vm439, %v459, %v414
        %v461 = vrot.slane %v416, 6
        %v462 = vsel %vm442, %v461, %v460
        %v463 = vrot.slane %v417, 5
        %v464 = vsel %vm445, %v463, %v462
        %v465 = vrot.slane %v418, 4
        %v466 = vsel %vm448, %v465, %v464
        %v467 = vrot.slane %v419, 3
        %v468 = vsel %vm451, %v467, %v466
        %v469 = vrot.slane %v420, 2
        %v470 = vsel %vm454, %v469, %v468
        %v471 = vrot.slane %v421, 1
        %v472 = vsel %vm457, %v471, %v470
        %v474 = vsel %vm324, %v398, 0
        %v476 = vsel %vm324, %v458, 0
        %v478 = vsel %vm324, %v472, 0
        %480 = vmatprep.subr.mxu0 0.0
        %481 = vmatpush1.xpose.msra.mxu0 %v476
        %482 = vmatprep.subr.mxu0 0.0
        %483 = vmatpush1.xpose.msra.mxu0 %v478
        %484 = vmatprep.subr.mxu0 0.0
        %485 = vmatpush1.xpose.msra.mxu0 0.0
        %486 = vmatprep.subr.mxu0 0.0
        %487 = vmatpush1.xpose.msra.mxu0 0.0
        %488 = vmatprep.subr.mxu0 0.0
        %489 = vmatpush1.xpose.msra.mxu0 0.0
        %490 = vmatprep.subr.mxu0 0.0
        %491 = vmatpush1.xpose.msra.mxu0 0.0
        %492 = vmatprep.subr.mxu0 0.0
        %493 = vmatpush1.xpose.msra.mxu0 0.0
        %494 = vmatprep.subr.mxu0 0.0
        %495 = vmatpush1.xpose.msra.mxu0 0.0
        %496 = vmatprep.subr.mxu0 0.0
        %497 = vmatpush1.xpose.msra.mxu0 0.0
        %498 = vmatprep.subr.mxu0 0.0
        %499 = vmatpush1.xpose.msra.mxu0 0.0
        %500 = vmatprep.subr.mxu0 0.0
        %501 = vmatpush1.xpose.msra.mxu0 0.0
        %502 = vmatprep.subr.mxu0 0.0
        %503 = vmatpush1.xpose.msra.mxu0 0.0
        %504 = vmatprep.subr.mxu0 0.0
        %505 = vmatpush1.xpose.msra.mxu0 0.0
        %506 = vmatprep.subr.mxu0 0.0
        %507 = vmatpush1.xpose.msra.mxu0 0.0
        %508 = vmatprep.subr.mxu0 0.0
        %509 = vmatpush1.xpose.msra.mxu0 0.0
        %510 = vmatprep.subr.mxu0 0.0
        %511 = vmatpush1.xpose.msra.mxu0 0.0
        %512 = vmatprep.subr.mxu0 0.0
        %513 = vmatpush1.xpose.msra.mxu0 0.0
        %514 = vmatprep.subr.mxu0 0.0
        %515 = vmatpush1.xpose.msra.mxu0 0.0
        %516 = vmatprep.subr.mxu0 0.0
        %517 = vmatpush1.xpose.msra.mxu0 0.0
        %518 = vmatprep.subr.mxu0 0.0
        %519 = vmatpush1.xpose.msra.mxu0 0.0
        %520 = vmatprep.subr.mxu0 0.0
        %521 = vmatpush1.xpose.msra.mxu0 0.0
        %522 = vmatprep.subr.mxu0 0.0
        %523 = vmatpush1.xpose.msra.mxu0 0.0
        %524 = vmatprep.subr.mxu0 0.0
        %525 = vmatpush1.xpose.msra.mxu0 0.0
        %526 = vmatprep.subr.mxu0 0.0
        %527 = vmatpush1.xpose.msra.mxu0 0.0
        %528 = vmatprep.subr.mxu0 0.0
        %529 = vmatpush1.xpose.msra.mxu0 0.0
        %530 = vmatprep.subr.mxu0 0.0
        %531 = vmatpush1.xpose.msra.mxu0 0.0
        %532 = vmatprep.subr.mxu0 0.0
        %533 = vmatpush1.xpose.msra.mxu0 0.0
        %534 = vmatprep.subr.mxu0 0.0
        %535 = vmatpush1.xpose.msra.mxu0 0.0
        %536 = vmatprep.subr.mxu0 0.0
        %537 = vmatpush1.xpose.msra.mxu0 0.0
        %538 = vmatprep.subr.mxu0 0.0
        %539 = vmatpush1.xpose.msra.mxu0 0.0
        %540 = vmatprep.subr.mxu0 0.0
        %541 = vmatpush1.xpose.msra.mxu0 0.0
        %542 = vmatprep.subr.mxu0 0.0
        %543 = vmatpush1.xpose.msra.mxu0 0.0
        %544 = vmatprep.mubr.f32.mxu0 0.0
        %545 = vmatmul.mubr.f32.gmra.mrb[0].mxu0 %v474
        %v546 = vpop.f32.mrb[0].mxu0
        %v547 = vadd.f32 0.0, %v546
        %v548 = vpop.f32.mrb[0].mxu0
        %549 = vdwg.mxu0
        %vm550 = vcmask 130048
        %v551 = vsel %vm550, %v547, -inf
        %552 = vmax.xlane.f32.xlu0 %v551
        %v553 = vpop.xlane.xlu0 %552
        %v554 = vsub.f32 %v547, %v553
        %v555 = vmul.f32 %v554, 1.442695
        %v556 = vpow.pop %v555
        %v557 = vsel %vm550, %v556, 0.0
        %558 = vadd.xlane.f32.xlu0 %v557
        %v559 = vpop.xlane.xlu0 %558
        %v560 = vrcp.pop %v559
        %v561 = vmul.f32 %v556, %v560
        %v565 = vsel %vm550, %v561, 0
        %567 = vmatprep.subr.mxu0 0.0
        %568 = vmatpush1.msra.mxu0 %v458
        %569 = vmatprep.subr.mxu0 0.0
        %570 = vmatpush1.msra.mxu0 %v472
        %571 = vmatprep.subr.mxu0 0.0
        %572 = vmatpush1.msra.mxu0 0.0
        %573 = vmatprep.subr.mxu0 0.0
        %574 = vmatpush1.msra.mxu0 0.0
        %575 = vmatprep.subr.mxu0 0.0
        %576 = vmatpush1.msra.mxu0 0.0
        %577 = vmatprep.subr.mxu0 0.0
        %578 = vmatpush1.msra.mxu0 0.0
        %579 = vmatprep.subr.mxu0 0.0
        %580 = vmatpush1.msra.mxu0 0.0
        %581 = vmatprep.subr.mxu0 0.0
        %582 = vmatpush1.msra.mxu0 0.0
        %583 = vmatprep.subr.mxu0 0.0
        %584 = vmatpush1.msra.mxu0 0.0
        %585 = vmatprep.subr.mxu0 0.0
        %586 = vmatpush1.msra.mxu0 0.0
        %587 = vmatprep.subr.mxu0 0.0
        %588 = vmatpush1.msra.mxu0 0.0
        %589 = vmatprep.subr.mxu0 0.0
        %590 = vmatpush1.msra.mxu0 0.0
        %591 = vmatprep.subr.mxu0 0.0
        %592 = vmatpush1.msra.mxu0 0.0
        %593 = vmatprep.subr.mxu0 0.0
        %594 = vmatpush1.msra.mxu0 0.0
        %595 = vmatprep.subr.mxu0 0.0
        %596 = vmatpush1.msra.mxu0 0.0
        %597 = vmatprep.subr.mxu0 0.0
        %598 = vmatpush1.msra.mxu0 0.0
        %599 = vmatprep.subr.mxu0 0.0
        %600 = vmatpush1.msra.mxu0 0.0
        %601 = vmatprep.subr.mxu0 0.0
        %602 = vmatpush1.msra.mxu0 0.0
        %603 = vmatprep.subr.mxu0 0.0
        %604 = vmatpush1.msra.mxu0 0.0
        %605 = vmatprep.subr.mxu0 0.0
        %606 = vmatpush1.msra.mxu0 0.0
        %607 = vmatprep.subr.mxu0 0.0
        %608 = vmatpush1.msra.mxu0 0.0
        %609 = vmatprep.subr.mxu0 0.0
        %610 = vmatpush1.msra.mxu0 0.0
        %611 = vmatprep.subr.mxu0 0.0
        %612 = vmatpush1.msra.mxu0 0.0
        %613 = vmatprep.subr.mxu0 0.0
        %614 = vmatpush1.msra.mxu0 0.0
        %615 = vmatprep.subr.mxu0 0.0
        %616 = vmatpush1.msra.mxu0 0.0
        %617 = vmatprep.subr.mxu0 0.0
        %618 = vmatpush1.msra.mxu0 0.0
        %619 = vmatprep.subr.mxu0 0.0
        %620 = vmatpush1.msra.mxu0 0.0
        %621 = vmatprep.subr.mxu0 0.0
        %622 = vmatpush1.msra.mxu0 0.0
        %623 = vmatprep.subr.mxu0 0.0
        %624 = vmatpush1.msra.mxu0 0.0
        %625 = vmatprep.subr.mxu0 0.0
        %626 = vmatpush1.msra.mxu0 0.0
        %627 = vmatprep.subr.mxu0 0.0
        %628 = vmatpush1.msra.mxu0 0.0
        %629 = vmatprep.subr.mxu0 0.0
        %630 = vmatpush1.msra.mxu0 0.0
        %631 = vmatprep.mubr.f32.mxu0 0.0
        %632 = vmatmul.mubr.f32.gmra.mrb[0].mxu0 %v565
        %v633 = vpop.f32.mrb[0].mxu0
        %v634 = vadd.f32 0.0, %v633
        %v635 = vpop.f32.mrb[0].mxu0
        %636 = vdwg.mxu0
        %637 = vst.msk [vmem:[#allocation2] sm:$0xff] %vm324, %v634
        %v638 = vld [vmem:[#allocation3] sm:$0xff]
        %v639 = vadd.f32 %v638, %v561
        %640 = vst.msk [vmem:[#allocation3] sm:$0xff] %vm550, %v639
        %v641 = vld [vmem:[%s298 + $0x1] sm:$0x1]
        %v642 = vld [vmem:[%s298 + $0x3] sm:$0x1]
        %v643 = vld [vmem:[%s298 + $0x5] sm:$0x1]
        %v644 = vld [vmem:[%s298 + $0x7] sm:$0x1]
        %v645 = vld [vmem:[%s298 + $0x9] sm:$0x1]
        %v646 = vld [vmem:[%s298 + $0xb] sm:$0x1]
        %v647 = vld [vmem:[%s298 + $0xd] sm:$0x1]
        %v648 = vld [vmem:[%s298 + $0xf] sm:$0x1]
        %v649 = vld [vmem:[%s298 + $0x11] sm:$0x1]
        %v650 = vld [vmem:[%s298 + $0x13] sm:$0x1]
        %v651 = vld [vmem:[%s298 + $0x15] sm:$0x1]
        %v652 = vld [vmem:[%s298 + $0x17] sm:$0x1]
        %v653 = vld [vmem:[%s298 + $0x19] sm:$0x1]
        %v654 = vld [vmem:[%s298 + $0x1b] sm:$0x1]
        %v655 = vld [vmem:[%s298 + $0x1d] sm:$0x1]
        %v656 = vld [vmem:[%s298 + $0x1f] sm:$0x1]
        %v673 = vrot.slane %v642, 7
        %v674 = vsel %vm439, %v673, %v641
        %v675 = vrot.slane %v643, 6
        %v676 = vsel %vm442, %v675, %v674
        %v677 = vrot.slane %v644, 5
        %v678 = vsel %vm445, %v677, %v676
        %v679 = vrot.slane %v645, 4
        %v680 = vsel %vm448, %v679, %v678
        %v681 = vrot.slane %v646, 3
        %v682 = vsel %vm451, %v681, %v680
        %v683 = vrot.slane %v647, 2
        %v684 = vsel %vm454, %v683, %v682
        %v685 = vrot.slane %v648, 1
        %v686 = vsel %vm457, %v685, %v684
        %v687 = vrot.slane %v650, 7
        %v688 = vsel %vm439, %v687, %v649
        %v689 = vrot.slane %v651, 6
        %v690 = vsel %vm442, %v689, %v688
        %v691 = vrot.slane %v652, 5
        %v692 = vsel %vm445, %v691, %v690
        %v693 = vrot.slane %v653, 4
        %v694 = vsel %vm448, %v693, %v692
        %v695 = vrot.slane %v654, 3
        %v696 = vsel %vm451, %v695, %v694
        %v697 = vrot.slane %v655, 2
        %v698 = vsel %vm454, %v697, %v696
        %v699 = vrot.slane %v656, 1
        %v700 = vsel %vm457, %v699, %v698
        %v702 = vsel %vm324, %v403, 0
        %v704 = vsel %vm324, %v686, 0
        %v706 = vsel %vm324, %v700, 0
        %708 = vmatprep.subr.mxu0 0.0
        %709 = vmatpush1.xpose.msra.mxu0 %v704
        %710 = vmatprep.subr.mxu0 0.0
        %711 = vmatpush1.xpose.msra.mxu0 %v706
        %712 = vmatprep.subr.mxu0 0.0
        %713 = vmatpush1.xpose.msra.mxu0 0.0
        %714 = vmatprep.subr.mxu0 0.0
        %715 = vmatpush1.xpose.msra.mxu0 0.0
        %716 = vmatprep.subr.mxu0 0.0
        %717 = vmatpush1.xpose.msra.mxu0 0.0
        %718 = vmatprep.subr.mxu0 0.0
        %719 = vmatpush1.xpose.msra.mxu0 0.0
        %720 = vmatprep.subr.mxu0 0.0
        %721 = vmatpush1.xpose.msra.mxu0 0.0
        %722 = vmatprep.subr.mxu0 0.0
        %723 = vmatpush1.xpose.msra.mxu0 0.0
        %724 = vmatprep.subr.mxu0 0.0
        %725 = vmatpush1.xpose.msra.mxu0 0.0
        %726 = vmatprep.subr.mxu0 0.0
        %727 = vmatpush1.xpose.msra.mxu0 0.0
        %728 = vmatprep.subr.mxu0 0.0
        %729 = vmatpush1.xpose.msra.mxu0 0.0
        %730 = vmatprep.subr.mxu0 0.0
        %731 = vmatpush1.xpose.msra.mxu0 0.0
        %732 = vmatprep.subr.mxu0 0.0
        %733 = vmatpush1.xpose.msra.mxu0 0.0
        %734 = vmatprep.subr.mxu0 0.0
        %735 = vmatpush1.xpose.msra.mxu0 0.0
        %736 = vmatprep.subr.mxu0 0.0
        %737 = vmatpush1.xpose.msra.mxu0 0.0
        %738 = vmatprep.subr.mxu0 0.0
        %739 = vmatpush1.xpose.msra.mxu0 0.0
        %740 = vmatprep.subr.mxu0 0.0
        %741 = vmatpush1.xpose.msra.mxu0 0.0
        %742 = vmatprep.subr.mxu0 0.0
        %743 = vmatpush1.xpose.msra.mxu0 0.0
        %744 = vmatprep.subr.mxu0 0.0
        %745 = vmatpush1.xpose.msra.mxu0 0.0
        %746 = vmatprep.subr.mxu0 0.0
        %747 = vmatpush1.xpose.msra.mxu0 0.0
        %748 = vmatprep.subr.mxu0 0.0
        %749 = vmatpush1.xpose.msra.mxu0 0.0
        %750 = vmatprep.subr.mxu0 0.0
        %751 = vmatpush1.xpose.msra.mxu0 0.0
        %752 = vmatprep.subr.mxu0 0.0
        %753 = vmatpush1.xpose.msra.mxu0 0.0
        %754 = vmatprep.subr.mxu0 0.0
        %755 = vmatpush1.xpose.msra.mxu0 0.0
        %756 = vmatprep.subr.mxu0 0.0
        %757 = vmatpush1.xpose.msra.mxu0 0.0
        %758 = vmatprep.subr.mxu0 0.0
        %759 = vmatpush1.xpose.msra.mxu0 0.0
        %760 = vmatprep.subr.mxu0 0.0
        %761 = vmatpush1.xpose.msra.mxu0 0.0
        %762 = vmatprep.subr.mxu0 0.0
        %763 = vmatpush1.xpose.msra.mxu0 0.0
        %764 = vmatprep.subr.mxu0 0.0
        %765 = vmatpush1.xpose.msra.mxu0 0.0
        %766 = vmatprep.subr.mxu0 0.0
        %767 = vmatpush1.xpose.msra.mxu0 0.0
        %768 = vmatprep.subr.mxu0 0.0
        %769 = vmatpush1.xpose.msra.mxu0 0.0
        %770 = vmatprep.subr.mxu0 0.0
        %771 = vmatpush1.xpose.msra.mxu0 0.0
        %772 = vmatprep.mubr.f32.mxu0 0.0
        %773 = vmatmul.mubr.f32.gmra.mrb[0].mxu0 %v702
        %v774 = vpop.f32.mrb[0].mxu0
        %v775 = vadd.f32 0.0, %v774
        %v776 = vpop.f32.mrb[0].mxu0
        %777 = vdwg.mxu0
        %v778 = vsel %vm550, %v775, -inf
        %779 = vmax.xlane.f32.xlu0 %v778
        %v780 = vpop.xlane.xlu0 %779
        %v781 = vsub.f32 %v775, %v780
        %v782 = vmul.f32 %v781, 1.442695
        %v783 = vpow.pop %v782
        %v784 = vsel %vm550, %v783, 0.0
        %785 = vadd.xlane.f32.xlu0 %v784
        %v786 = vpop.xlane.xlu0 %785
        %v787 = vrcp.pop %v786
        %v788 = vmul.f32 %v783, %v787
        %v792 = vsel %vm550, %v788, 0
        %794 = vmatprep.subr.mxu0 0.0
        %795 = vmatpush1.msra.mxu0 %v686
        %796 = vmatprep.subr.mxu0 0.0
        %797 = vmatpush1.msra.mxu0 %v700
        %798 = vmatprep.subr.mxu0 0.0
        %799 = vmatpush1.msra.mxu0 0.0
        %800 = vmatprep.subr.mxu0 0.0
        %801 = vmatpush1.msra.mxu0 0.0
        %802 = vmatprep.subr.mxu0 0.0
        %803 = vmatpush1.msra.mxu0 0.0
        %804 = vmatprep.subr.mxu0 0.0
        %805 = vmatpush1.msra.mxu0 0.0
        %806 = vmatprep.subr.mxu0 0.0
        %807 = vmatpush1.msra.mxu0 0.0
        %808 = vmatprep.subr.mxu0 0.0
        %809 = vmatpush1.msra.mxu0 0.0
        %810 = vmatprep.subr.mxu0 0.0
        %811 = vmatpush1.msra.mxu0 0.0
        %812 = vmatprep.subr.mxu0 0.0
        %813 = vmatpush1.msra.mxu0 0.0
        %814 = vmatprep.subr.mxu0 0.0
        %815 = vmatpush1.msra.mxu0 0.0
        %816 = vmatprep.subr.mxu0 0.0
        %817 = vmatpush1.msra.mxu0 0.0
        %818 = vmatprep.subr.mxu0 0.0
        %819 = vmatpush1.msra.mxu0 0.0
        %820 = vmatprep.subr.mxu0 0.0
        %821 = vmatpush1.msra.mxu0 0.0
        %822 = vmatprep.subr.mxu0 0.0
        %823 = vmatpush1.msra.mxu0 0.0
        %824 = vmatprep.subr.mxu0 0.0
        %825 = vmatpush1.msra.mxu0 0.0
        %826 = vmatprep.subr.mxu0 0.0
        %827 = vmatpush1.msra.mxu0 0.0
        %828 = vmatprep.subr.mxu0 0.0
        %829 = vmatpush1.msra.mxu0 0.0
        %830 = vmatprep.subr.mxu0 0.0
        %831 = vmatpush1.msra.mxu0 0.0
        %832 = vmatprep.subr.mxu0 0.0
        %833 = vmatpush1.msra.mxu0 0.0
        %834 = vmatprep.subr.mxu0 0.0
        %835 = vmatpush1.msra.mxu0 0.0
        %836 = vmatprep.subr.mxu0 0.0
        %837 = vmatpush1.msra.mxu0 0.0
        %838 = vmatprep.subr.mxu0 0.0
        %839 = vmatpush1.msra.mxu0 0.0
        %840 = vmatprep.subr.mxu0 0.0
        %841 = vmatpush1.msra.mxu0 0.0
        %842 = vmatprep.subr.mxu0 0.0
        %843 = vmatpush1.msra.mxu0 0.0
        %844 = vmatprep.subr.mxu0 0.0
        %845 = vmatpush1.msra.mxu0 0.0
        %846 = vmatprep.subr.mxu0 0.0
        %847 = vmatpush1.msra.mxu0 0.0
        %848 = vmatprep.subr.mxu0 0.0
        %849 = vmatpush1.msra.mxu0 0.0
        %850 = vmatprep.subr.mxu0 0.0
        %851 = vmatpush1.msra.mxu0 0.0
        %852 = vmatprep.subr.mxu0 0.0
        %853 = vmatpush1.msra.mxu0 0.0
        %854 = vmatprep.subr.mxu0 0.0
        %855 = vmatpush1.msra.mxu0 0.0
        %856 = vmatprep.subr.mxu0 0.0
        %857 = vmatpush1.msra.mxu0 0.0
        %858 = vmatprep.mubr.f32.mxu0 0.0
        %859 = vmatmul.mubr.f32.gmra.mrb[0].mxu0 %v792
        %v860 = vpop.f32.mrb[0].mxu0
        %v861 = vadd.f32 0.0, %v860
        %v862 = vpop.f32.mrb[0].mxu0
        %863 = vdwg.mxu0
        %864 = vst.msk [vmem:[#allocation2 + $0x8] sm:$0xff] %vm324, %v861
        %s865 = scalar_lea.vmem [#allocation3], 8
        %v866 = vld [vmem:[%s865] sm:$0xff]
        %v867 = vadd.f32 %v866, %v788
        %868 = vst.msk [vmem:[%s865] sm:$0xff] %vm550, %v867
        %v869 = vld [vmem:[#allocation2] sm:$0xff]
        %v870 = vld [vmem:[#allocation2 + $0x8] sm:$0xff]
        %871 = vmatprep.subr.mxu0 0.0
        %872 = vmatpush1.msra.mxu0 %v318
        %873 = vmatprep.subr.mxu0 0.0
        %874 = vmatpush1.msra.mxu0 %v319
        %875 = vmatprep.subr.mxu0 0.0
        %876 = vmatpush1.msra.mxu0 %v320
        %877 = vmatprep.subr.mxu0 0.0
        %878 = vmatpush1.msra.mxu0 %v321
        %879 = vmatprep.subr.mxu0 0.0
        %880 = vmatpush1.msra.mxu0 0.0
        %881 = vmatprep.subr.mxu0 0.0
        %882 = vmatpush1.msra.mxu0 0.0
        %883 = vmatprep.subr.mxu0 0.0
        %884 = vmatpush1.msra.mxu0 0.0
        %885 = vmatprep.subr.mxu0 0.0
        %886 = vmatpush1.msra.mxu0 0.0
        %887 = vmatprep.subr.mxu0 0.0
        %888 = vmatpush1.msra.mxu0 0.0
        %889 = vmatprep.subr.mxu0 0.0
        %890 = vmatpush1.msra.mxu0 0.0
        %891 = vmatprep.subr.mxu0 0.0
        %892 = vmatpush1.msra.mxu0 0.0
        %893 = vmatprep.subr.mxu0 0.0
        %894 = vmatpush1.msra.mxu0 0.0
        %895 = vmatprep.subr.mxu0 0.0
        %896 = vmatpush1.msra.mxu0 0.0
        %897 = vmatprep.subr.mxu0 0.0
        %898 = vmatpush1.msra.mxu0 0.0
        %899 = vmatprep.subr.mxu0 0.0
        %900 = vmatpush1.msra.mxu0 0.0
        %901 = vmatprep.subr.mxu0 0.0
        %902 = vmatpush1.msra.mxu0 0.0
        %903 = vmatprep.subr.mxu0 0.0
        %904 = vmatpush1.msra.mxu0 0.0
        %905 = vmatprep.subr.mxu0 0.0
        %906 = vmatpush1.msra.mxu0 0.0
        %907 = vmatprep.subr.mxu0 0.0
        %908 = vmatpush1.msra.mxu0 0.0
        %909 = vmatprep.subr.mxu0 0.0
        %910 = vmatpush1.msra.mxu0 0.0
        %911 = vmatprep.subr.mxu0 0.0
        %912 = vmatpush1.msra.mxu0 0.0
        %913 = vmatprep.subr.mxu0 0.0
        %914 = vmatpush1.msra.mxu0 0.0
        %915 = vmatprep.subr.mxu0 0.0
        %916 = vmatpush1.msra.mxu0 0.0
        %917 = vmatprep.subr.mxu0 0.0
        %918 = vmatpush1.msra.mxu0 0.0
        %919 = vmatprep.subr.mxu0 0.0
        %920 = vmatpush1.msra.mxu0 0.0
        %921 = vmatprep.subr.mxu0 0.0
        %922 = vmatpush1.msra.mxu0 0.0
        %923 = vmatprep.subr.mxu0 0.0
        %924 = vmatpush1.msra.mxu0 0.0
        %925 = vmatprep.subr.mxu0 0.0
        %926 = vmatpush1.msra.mxu0 0.0
        %927 = vmatprep.subr.mxu0 0.0
        %928 = vmatpush1.msra.mxu0 0.0
        %929 = vmatprep.subr.mxu0 0.0
        %930 = vmatpush1.msra.mxu0 0.0
        %931 = vmatprep.subr.mxu0 0.0
        %932 = vmatpush1.msra.mxu0 0.0
        %933 = vmatprep.subr.mxu0 0.0
        %934 = vmatpush1.msra.mxu0 0.0
        %935 = vmatprep.mubr.f32.mxu0 0.0
        %936 = vmatmul.mubr.f32.gmra.mrb[0].mxu0 %v474
        %v937 = vpop.f32.mrb[0].mxu0
        %v938 = vadd.f32 0.0, %v937
        %v939 = vpop.f32.mrb[0].mxu0
        %940 = vmatprep.mubr.f32.mxu0 0.0
        %941 = vmatmul.mubr.f32.gmra.mrb[0].mxu0 %v702
        %v942 = vpop.f32.mrb[0].mxu0
        %v943 = vadd.f32 0.0, %v942
        %v944 = vpop.f32.mrb[0].mxu0
        %945 = vdwg.mxu0
        %v947 = vsel %vm324, %v869, 0
        %v950 = vsel %vm324, %v870, 0
        %952 = vmatprep.subr.mxu0 0.0
        %953 = vmatpush1.msra.mxu0 %v313
        %954 = vmatprep.subr.mxu0 0.0
        %955 = vmatpush1.msra.mxu0 %v314
        %956 = vmatprep.subr.mxu0 0.0
        %957 = vmatpush1.msra.mxu0 %v315
        %958 = vmatprep.subr.mxu0 0.0
        %959 = vmatpush1.msra.mxu0 %v316
        %960 = vmatprep.subr.mxu0 0.0
        %961 = vmatpush1.msra.mxu0 0.0
        %962 = vmatprep.subr.mxu0 0.0
        %963 = vmatpush1.msra.mxu0 0.0
        %964 = vmatprep.subr.mxu0 0.0
        %965 = vmatpush1.msra.mxu0 0.0
        %966 = vmatprep.subr.mxu0 0.0
        %967 = vmatpush1.msra.mxu0 0.0
        %968 = vmatprep.subr.mxu0 0.0
        %969 = vmatpush1.msra.mxu0 0.0
        %970 = vmatprep.subr.mxu0 0.0
        %971 = vmatpush1.msra.mxu0 0.0
        %972 = vmatprep.subr.mxu0 0.0
        %973 = vmatpush1.msra.mxu0 0.0
        %974 = vmatprep.subr.mxu0 0.0
        %975 = vmatpush1.msra.mxu0 0.0
        %976 = vmatprep.subr.mxu0 0.0
        %977 = vmatpush1.msra.mxu0 0.0
        %978 = vmatprep.subr.mxu0 0.0
        %979 = vmatpush1.msra.mxu0 0.0
        %980 = vmatprep.subr.mxu0 0.0
        %981 = vmatpush1.msra.mxu0 0.0
        %982 = vmatprep.subr.mxu0 0.0
        %983 = vmatpush1.msra.mxu0 0.0
        %984 = vmatprep.subr.mxu0 0.0
        %985 = vmatpush1.msra.mxu0 0.0
        %986 = vmatprep.subr.mxu0 0.0
        %987 = vmatpush1.msra.mxu0 0.0
        %988 = vmatprep.subr.mxu0 0.0
        %989 = vmatpush1.msra.mxu0 0.0
        %990 = vmatprep.subr.mxu0 0.0
        %991 = vmatpush1.msra.mxu0 0.0
        %992 = vmatprep.subr.mxu0 0.0
        %993 = vmatpush1.msra.mxu0 0.0
        %994 = vmatprep.subr.mxu0 0.0
        %995 = vmatpush1.msra.mxu0 0.0
        %996 = vmatprep.subr.mxu0 0.0
        %997 = vmatpush1.msra.mxu0 0.0
        %998 = vmatprep.subr.mxu0 0.0
        %999 = vmatpush1.msra.mxu0 0.0
        %1000 = vmatprep.subr.mxu0 0.0
        %1001 = vmatpush1.msra.mxu0 0.0
        %1002 = vmatprep.subr.mxu0 0.0
        %1003 = vmatpush1.msra.mxu0 0.0
        %1004 = vmatprep.subr.mxu0 0.0
        %1005 = vmatpush1.msra.mxu0 0.0
        %1006 = vmatprep.subr.mxu0 0.0
        %1007 = vmatpush1.msra.mxu0 0.0
        %1008 = vmatprep.subr.mxu0 0.0
        %1009 = vmatpush1.msra.mxu0 0.0
        %1010 = vmatprep.subr.mxu0 0.0
        %1011 = vmatpush1.msra.mxu0 0.0
        %1012 = vmatprep.subr.mxu0 0.0
        %1013 = vmatpush1.msra.mxu0 0.0
        %1014 = vmatprep.subr.mxu0 0.0
        %1015 = vmatpush1.msra.mxu0 0.0
        %1016 = vmatprep.mubr.f32.mxu0 0.0
        %1017 = vmatmul.mubr.f32.gmra.mrb[0].mxu0 %v947
        %v1018 = vpop.f32.mrb[0].mxu0
        %v1019 = vadd.f32 %v938, %v1018
        %v1020 = vpop.f32.mrb[0].mxu0
        %1021 = vmatprep.mubr.f32.mxu0 0.0
        %1022 = vmatmul.mubr.f32.gmra.mrb[0].mxu0 %v950
        %v1023 = vpop.f32.mrb[0].mxu0
        %v1024 = vadd.f32 %v943, %v1023
        %v1025 = vpop.f32.mrb[0].mxu0
        %1026 = vdwg.mxu0
        %v1027 = vtanh.pop %v1019
        %v1028 = vtanh.pop %v1024
        %v1030 = vcombine.high %v1027, %v1027
        %v1032 = vunpack.c.l.s4 1966171168
        %v1033 = vunpack.c.0.s8 %v1032
        %v1034 = vlaneseq
        %v1035 = vshrl.u32 %v1034, 7
        %v1036 = vsub.s32 %v1033, %v1035
        %v1037 = vrot.slane %v1027, %v1036
        %v1039 = vunpack.c.l.s4 1966171168
        %v1040 = vunpack.c.0.s8 %v1039
        %v1041 = vlaneseq
        %v1042 = vshrl.u32 %v1041, 7
        %v1043 = vsub.s32 %v1040, %v1042
        %v1044 = vrot.slane %v1030, %v1043
        %v1045 = vcombine.high %v1037, %v1037
        %v1046 = vcombine.high %v1044, %v1044
        %v1048 = vunpack.c.l.s4 1966171168
        %v1049 = vunpack.c.0.s8 %v1048
        %v1050 = vlaneseq
        %v1051 = vshrl.u32 %v1050, 7
        %v1052 = vsub.s32 %v1049, %v1051
        %v1053 = vrot.slane %v1037, %v1052
        %v1055 = vunpack.c.l.s4 1966171168
        %v1056 = vunpack.c.0.s8 %v1055
        %v1057 = vlaneseq
        %v1058 = vshrl.u32 %v1057, 7
        %v1059 = vsub.s32 %v1056, %v1058
        %v1060 = vrot.slane %v1044, %v1059
        %v1062 = vunpack.c.l.s4 1966171168
        %v1063 = vunpack.c.0.s8 %v1062
        %v1064 = vlaneseq
        %v1065 = vshrl.u32 %v1064, 7
        %v1066 = vsub.s32 %v1063, %v1065
        %v1067 = vrot.slane %v1045, %v1066
        %v1069 = vunpack.c.l.s4 1966171168
        %v1070 = vunpack.c.0.s8 %v1069
        %v1071 = vlaneseq
        %v1072 = vshrl.u32 %v1071, 7
        %v1073 = vsub.s32 %v1070, %v1072
        %v1074 = vrot.slane %v1046, %v1073
        %v1075 = vcombine.high %v1053, %v1053
        %v1076 = vcombine.high %v1060, %v1060
        %v1077 = vcombine.high %v1067, %v1067
        %v1078 = vcombine.high %v1074, %v1074
        %vm1087 = vcmask 253952
        %1088 = vst.msk [vmem:[%s286] sm:$0x1] %vm1087, %v1053
        %1089 = vst.msk [vmem:[%s286 + $0x2] sm:$0x1] %vm1087, %v1067
        %1090 = vst.msk [vmem:[%s286 + $0x4] sm:$0x1] %vm1087, %v1075
        %1091 = vst.msk [vmem:[%s286 + $0x6] sm:$0x1] %vm1087, %v1077
        %1092 = vst.msk [vmem:[%s286 + $0x8] sm:$0x1] %vm1087, %v1060
        %1093 = vst.msk [vmem:[%s286 + $0xa] sm:$0x1] %vm1087, %v1074
        %1094 = vst.msk [vmem:[%s286 + $0xc] sm:$0x1] %vm1087, %v1076
        %1095 = vst.msk [vmem:[%s286 + $0xe] sm:$0x1] %vm1087, %v1078
        %v1097 = vcombine.high %v1028, %v1028
        %v1099 = vunpack.c.l.s4 1966171168
        %v1100 = vunpack.c.0.s8 %v1099
        %v1101 = vlaneseq
        %v1102 = vshrl.u32 %v1101, 7
        %v1103 = vsub.s32 %v1100, %v1102
        %v1104 = vrot.slane %v1028, %v1103
        %v1106 = vunpack.c.l.s4 1966171168
        %v1107 = vunpack.c.0.s8 %v1106
        %v1108 = vlaneseq
        %v1109 = vshrl.u32 %v1108, 7
        %v1110 = vsub.s32 %v1107, %v1109
        %v1111 = vrot.slane %v1097, %v1110
        %v1112 = vcombine.high %v1104, %v1104
        %v1113 = vcombine.high %v1111, %v1111
        %v1115 = vunpack.c.l.s4 1966171168
        %v1116 = vunpack.c.0.s8 %v1115
        %v1117 = vlaneseq
        %v1118 = vshrl.u32 %v1117, 7
        %v1119 = vsub.s32 %v1116, %v1118
        %v1120 = vrot.slane %v1104, %v1119
        %v1122 = vunpack.c.l.s4 1966171168
        %v1123 = vunpack.c.0.s8 %v1122
        %v1124 = vlaneseq
        %v1125 = vshrl.u32 %v1124, 7
        %v1126 = vsub.s32 %v1123, %v1125
        %v1127 = vrot.slane %v1111, %v1126
        %v1129 = vunpack.c.l.s4 1966171168
        %v1130 = vunpack.c.0.s8 %v1129
        %v1131 = vlaneseq
        %v1132 = vshrl.u32 %v1131, 7
        %v1133 = vsub.s32 %v1130, %v1132
        %v1134 = vrot.slane %v1112, %v1133
        %v1136 = vunpack.c.l.s4 1966171168
        %v1137 = vunpack.c.0.s8 %v1136
        %v1138 = vlaneseq
        %v1139 = vshrl.u32 %v1138, 7
        %v1140 = vsub.s32 %v1137, %v1139
        %v1141 = vrot.slane %v1113, %v1140
        %v1142 = vcombine.high %v1120, %v1120
        %v1143 = vcombine.high %v1127, %v1127
        %v1144 = vcombine.high %v1134, %v1134
        %v1145 = vcombine.high %v1141, %v1141
        %1154 = vst.msk [vmem:[%s286 + $0x1] sm:$0x1] %vm1087, %v1120
        %1155 = vst.msk [vmem:[%s286 + $0x3] sm:$0x1] %vm1087, %v1134
        %1156 = vst.msk [vmem:[%s286 + $0x5] sm:$0x1] %vm1087, %v1142
        %1157 = vst.msk [vmem:[%s286 + $0x7] sm:$0x1] %vm1087, %v1144
        %1158 = vst.msk [vmem:[%s286 + $0x9] sm:$0x1] %vm1087, %v1127
        %1159 = vst.msk [vmem:[%s286 + $0xb] sm:$0x1] %vm1087, %v1141
        %1160 = vst.msk [vmem:[%s286 + $0xd] sm:$0x1] %vm1087, %v1143
        %1161 = vst.msk [vmem:[%s286 + $0xf] sm:$0x1] %vm1087, %v1145
        %p1162 = scmp.eq.s32.totalorder %s24, 1
        // Predicated region
        $region53: #{ensemble_decoder_forward.1} parent=39 // pred_check
          %p1163 = pneg %p1162
        $region54: #{ensemble_decoder_forward.1} parent=39 // pred_check_branch
          %1165 = sbr.rel (%p1163) target = $region56
        $region55: #{ensemble_decoder_forward.1} parent=39 // pred_region
          %v1166 = vld [vmem:[#allocation3] sm:$0xff]
          %v1167 = vmul.f32 %v1166, 0.5
          %v1169 = vcombine.high %v1167, %v1167
          %v1171 = vunpack.c.l.s4 1966171168
          %v1172 = vunpack.c.0.s8 %v1171
          %v1173 = vlaneseq
          %v1174 = vshrl.u32 %v1173, 7
          %v1175 = vsub.s32 %v1172, %v1174
          %v1176 = vrot.slane %v1167, %v1175
          %v1178 = vunpack.c.l.s4 1966171168
          %v1179 = vunpack.c.0.s8 %v1178
          %v1180 = vlaneseq
          %v1181 = vshrl.u32 %v1180, 7
          %v1182 = vsub.s32 %v1179, %v1181
          %v1183 = vrot.slane %v1169, %v1182
          %v1184 = vcombine.high %v1176, %v1176
          %v1185 = vcombine.high %v1183, %v1183
          %v1187 = vunpack.c.l.s4 1966171168
          %v1188 = vunpack.c.0.s8 %v1187
          %v1189 = vlaneseq
          %v1190 = vshrl.u32 %v1189, 7
          %v1191 = vsub.s32 %v1188, %v1190
          %v1192 = vrot.slane %v1176, %v1191
          %v1194 = vunpack.c.l.s4 1966171168
          %v1195 = vunpack.c.0.s8 %v1194
          %v1196 = vlaneseq
          %v1197 = vshrl.u32 %v1196, 7
          %v1198 = vsub.s32 %v1195, %v1197
          %v1199 = vrot.slane %v1183, %v1198
          %v1201 = vunpack.c.l.s4 1966171168
          %v1202 = vunpack.c.0.s8 %v1201
          %v1203 = vlaneseq
          %v1204 = vshrl.u32 %v1203, 7
          %v1205 = vsub.s32 %v1202, %v1204
          %v1206 = vrot.slane %v1184, %v1205
          %v1208 = vunpack.c.l.s4 1966171168
          %v1209 = vunpack.c.0.s8 %v1208
          %v1210 = vlaneseq
          %v1211 = vshrl.u32 %v1210, 7
          %v1212 = vsub.s32 %v1209, %v1211
          %v1213 = vrot.slane %v1185, %v1212
          %v1214 = vcombine.high %v1192, %v1192
          %v1215 = vcombine.high %v1199, %v1199
          %v1216 = vcombine.high %v1206, %v1206
          %v1217 = vcombine.high %v1213, %v1213
          %vm1226 = vcmask 122880
          %1227 = vst.msk [vmem:[#allocation10] sm:$0x1] %vm1226, %v1192
          %1228 = vst.msk [vmem:[#allocation10 + $0x2] sm:$0x1] %vm1226, %v1206
          %1229 = vst.msk [vmem:[#allocation10 + $0x4] sm:$0x1] %vm1226, %v1214
          %1230 = vst.msk [vmem:[#allocation10 + $0x6] sm:$0x1] %vm1226, %v1216
          %1231 = vst.msk [vmem:[#allocation10 + $0x8] sm:$0x1] %vm1226, %v1199
          %1232 = vst.msk [vmem:[#allocation10 + $0xa] sm:$0x1] %vm1226, %v1213
          %1233 = vst.msk [vmem:[#allocation10 + $0xc] sm:$0x1] %vm1226, %v1215
          %1234 = vst.msk [vmem:[#allocation10 + $0xe] sm:$0x1] %vm1226, %v1217
          %v1235 = vld [vmem:[%s865] sm:$0xff]
          %v1236 = vmul.f32 %v1235, 0.5
          %v1238 = vcombine.high %v1236, %v1236
          %v1240 = vunpack.c.l.s4 1966171168
          %v1241 = vunpack.c.0.s8 %v1240
          %v1242 = vlaneseq
          %v1243 = vshrl.u32 %v1242, 7
          %v1244 = vsub.s32 %v1241, %v1243
          %v1245 = vrot.slane %v1236, %v1244
          %v1247 = vunpack.c.l.s4 1966171168
          %v1248 = vunpack.c.0.s8 %v1247
          %v1249 = vlaneseq
          %v1250 = vshrl.u32 %v1249, 7
          %v1251 = vsub.s32 %v1248, %v1250
          %v1252 = vrot.slane %v1238, %v1251
          %v1253 = vcombine.high %v1245, %v1245
          %v1254 = vcombine.high %v1252, %v1252
          %v1256 = vunpack.c.l.s4 1966171168
          %v1257 = vunpack.c.0.s8 %v1256
          %v1258 = vlaneseq
          %v1259 = vshrl.u32 %v1258, 7
          %v1260 = vsub.s32 %v1257, %v1259
          %v1261 = vrot.slane %v1245, %v1260
          %v1263 = vunpack.c.l.s4 1966171168
          %v1264 = vunpack.c.0.s8 %v1263
          %v1265 = vlaneseq
          %v1266 = vshrl.u32 %v1265, 7
          %v1267 = vsub.s32 %v1264, %v1266
          %v1268 = vrot.slane %v1252, %v1267
          %v1270 = vunpack.c.l.s4 1966171168
          %v1271 = vunpack.c.0.s8 %v1270
          %v1272 = vlaneseq
          %v1273 = vshrl.u32 %v1272, 7
          %v1274 = vsub.s32 %v1271, %v1273
          %v1275 = vrot.slane %v1253, %v1274
          %v1277 = vunpack.c.l.s4 1966171168
          %v1278 = vunpack.c.0.s8 %v1277
          %v1279 = vlaneseq
          %v1280 = vshrl.u32 %v1279, 7
          %v1281 = vsub.s32 %v1278, %v1280
          %v1282 = vrot.slane %v1254, %v1281
          %v1283 = vcombine.high %v1261, %v1261
          %v1284 = vcombine.high %v1268, %v1268
          %v1285 = vcombine.high %v1275, %v1275
          %v1286 = vcombine.high %v1282, %v1282
          %1295 = vst.msk [vmem:[#allocation10 + $0x1] sm:$0x1] %vm1226, %v1261
          %1296 = vst.msk [vmem:[#allocation10 + $0x3] sm:$0x1] %vm1226, %v1275
          %1297 = vst.msk [vmem:[#allocation10 + $0x5] sm:$0x1] %vm1226, %v1283
          %1298 = vst.msk [vmem:[#allocation10 + $0x7] sm:$0x1] %vm1226, %v1285
          %1299 = vst.msk [vmem:[#allocation10 + $0x9] sm:$0x1] %vm1226, %v1268
          %1300 = vst.msk [vmem:[#allocation10 + $0xb] sm:$0x1] %vm1226, %v1282
          %1301 = vst.msk [vmem:[#allocation10 + $0xd] sm:$0x1] %vm1226, %v1284
          %1302 = vst.msk [vmem:[#allocation10 + $0xf] sm:$0x1] %vm1226, %v1286
        $region56: #{ensemble_decoder_forward.1} parent=39 // pred_fallthru
          _
        %s1303 = sand.u32 %s147, 1
        %s1304 = scalar_lea.sflag [#allocation6], %s1303
        %s1305 = sand.u32 %s147, 1
        %s1306 = smul.addr %s1305, 16
        %s1307 = scalar_lea.vmem [#allocation9], %s1306
        // Predicated region
        $region57: #{ensemble_decoder_forward.1} parent=39 // pred_check
          %p1308 = pneg %p157
        $region58: #{ensemble_decoder_forward.1} parent=39 // pred_check_branch
          %1310 = sbr.rel (%p1308) target = $region60
        $region59: #{ensemble_decoder_forward.1} parent=39 // pred_region
          %s1312 = ssub.s32 256, 256
          %1313 = vsyncadd %s1304, %s1312
          %s1314 = smul.addr %s24, 8
          %s1315 = smul.addr %s1314, 32
          %s1316 = scalar_lea.hbm %s5, %s1315
          %s1317 = sshll.u32 %s1307, 4
          %s1318 = int_to_ptr.vmem [resolvable:$true] %s1317
          %1323 = dma.vmem_to_hbm [thread:$0]  %s1318, 256, %s1316, %s1304, 32, 32, 2
        $region60: #{ensemble_decoder_forward.1} parent=39 // pred_fallthru
          _
        // Predicated region
        $region61: #{ensemble_decoder_forward.1} parent=39 // pred_check
          %p1324 = pneg %p178
        $region62: #{ensemble_decoder_forward.1} parent=39 // pred_check_branch
          %1326 = sbr.rel (%p1324) target = $region64
        $region63: #{ensemble_decoder_forward.1} parent=39 // pred_region
          %s1328 = ssub.s32 256, 256
          %1329 = vsyncadd [#allocation11], %s1328
          %s1330 = sshll.u32 [#allocation10], 4
          %s1331 = int_to_ptr.vmem [resolvable:$true] %s1330
          %1336 = dma.vmem_to_hbm [thread:$0]  %s1331, 256, %s6, [#allocation11], 32, 32, 2
        $region64: #{ensemble_decoder_forward.1} parent=39 // pred_fallthru
          _
        // Predicated region
        $region65: #{ensemble_decoder_forward.1} parent=39 // pred_check
          %p1337 = pneg %p178
        $region66: #{ensemble_decoder_forward.1} parent=39 // pred_check_branch
          %1339 = sbr.rel (%p1337) target = $region68
        $region67: #{ensemble_decoder_forward.1} parent=39 // pred_region
          %1340 = dma.done [#allocation11], 256
        $region68: #{ensemble_decoder_forward.1} parent=39 // pred_fallthru
          _
      $region40: #{ensemble_decoder_forward.1} parent=5 // pred_fallthru
        _
      %p1341 = scmp.le.s32.totalorder 2, %s19
      // Predicated region
      $region69: #{ensemble_decoder_forward.1} parent=5 // pred_check
        %p1342 = pneg %p1341
      $region70: #{ensemble_decoder_forward.1} parent=5 // pred_check_branch
        %1344 = sbr.rel (%p1342) target = $region72
      $region71: #{ensemble_decoder_forward.1} parent=5 // pred_region
        %s1345 = ssub.s32 %s19, 2
        // Predicated region
        $region73: #{ensemble_decoder_forward.1} parent=71 // pred_check
          %p1346 = pneg %p163
        $region74: #{ensemble_decoder_forward.1} parent=71 // pred_check_branch
          %1348 = sbr.rel (%p1346) target = $region76
        $region75: #{ensemble_decoder_forward.1} parent=71 // pred_region
          %s1349 = sand.u32 %s148, 1
          %s1350 = scalar_lea.sflag [#allocation6], %s1349
          %s1351 = sand.u32 %s148, 1
          %s1352 = smul.addr %s1351, 16
          %s1353 = scalar_lea.vmem [#allocation9], %s1352
          %1354 = dma.done %s1350, 256
        $region76: #{ensemble_decoder_forward.1} parent=71 // pred_fallthru
          _
      $region72: #{ensemble_decoder_forward.1} parent=5 // pred_fallthru
        _
    $region6: #{ensemble_decoder_forward.1} parent=1 // loop_footer
      %s23 = sadd.s32 1, %s19
    $region7: #{ensemble_decoder_forward.1} parent=1 // loop_footer_branch
      %18 = sbr.rel target = $region3
    $region8: #{ensemble_decoder_forward.1} parent=1 // loop_exit
      _
    %1355 = vsyncpa [#allocation5], 1
    %s1356 = scalar_lea.sflag [#allocation5], 1
    %1357 = vsyncpa %s1356, 1
    %1358 = vsyncpa [#allocation8], 1
    %1359 = vsyncpa [#allocation6], 1
    %s1360 = scalar_lea.sflag [#allocation6], 1
    %1361 = vsyncpa %s1360, 1
    %1362 = vsyncpa [#allocation11], 1

</llo_original>
